<compile_context>
chip_gen: v6e
topology: v6e:2x2x1
jax: 0.10.0
libtpu: 0.0.40
codegen_flags: <defaults>
</compile_context>

<pallas_src>
import functools

import jax
import jax.numpy as jnp
import numpy as np
from jax import lax
from jax.experimental import pallas as pl
from jax.experimental.pallas import tpu as pltpu


def _latent_kernel(x_ref, wih_ref, whh_ref, bgi_ref, bhn_ref, o_ref,
                   act_ref, gi_ref, h_ref, *, T, Bp, D, static_unroll):
    """Fused multi-layer GRU.  Grid: (batch_shards "parallel", layers "arbitrary").

    x_ref  : (1, T*Bp, D)    input slab for this batch shard (used at layer 0)
    wih_ref: (1, D, 3D)      W_ih^T, gates concatenated (r|z|n) on the lane axis
    whh_ref: (1, D, 3D)      W_hh^T, gates concatenated (r|z|n) on the lane axis
    bgi_ref: (1, 1, 3D)      b_ih + [b_hh_r, b_hh_z, 0]  (folded into hoisted gi)
    bhn_ref: (1, 1, D)       b_hh_n (applied inside the r-gated term)
    o_ref  : (1, T*Bp, D)    output slab (written at the last layer, ReLU fused)
    act_ref: (T*Bp, D)  f32  inter-layer activation, resident in VMEM across layers
    gi_ref : (T*Bp, 3D) f32  hoisted input projection for the current layer
    h_ref  : (Bp, D)    f32  hidden state
    """
    layer = pl.program_id(1)
    num_layers = pl.num_programs(1)

    @pl.when(layer == 0)
    def _():
        act_ref[...] = x_ref[0].astype(jnp.float32)

    w_ih = wih_ref[0]          # (D, 3D)
    w_hh = whh_ref[0]          # (D, 3D)
    b_gi = bgi_ref[0]          # (1, 3D)
    b_hn = bhn_ref[0]          # (1, D)

    # ---- Hoisted, time-parallel input projection: one big MXU matmul per layer.
    gi_ref[...] = (
        jnp.dot(act_ref[...], w_ih, preferred_element_type=jnp.float32) + b_gi)

    # ---- Serial recurrence: only h @ W_hh remains on the critical path.
    h_ref[...] = jnp.zeros_like(h_ref)

    def step(t):
        row = t * Bp
        if not isinstance(row, int):
            row = pl.multiple_of(row, Bp)           # Bp is a multiple of 8
        gi_t = gi_ref[pl.ds(row, Bp), :]            # (Bp, 3D)
        h_prev = h_ref[...]                         # (Bp, D)
        gh = jnp.dot(h_prev, w_hh, preferred_element_type=jnp.float32)  # (Bp, 3D)
        # Fused r|z gate: one sigmoid over the concatenated (Bp, 2D) block.
        rz = jax.nn.sigmoid(gi_t[:, :2 * D] + gh[:, :2 * D])
        r = rz[:, :D]
        z = rz[:, D:]
        n = jnp.tanh(gi_t[:, 2 * D:] + r * (gh[:, 2 * D:] + b_hn))
        h_new = (1.0 - z) * n + z * h_prev
        h_ref[...] = h_new
        act_ref[pl.ds(row, Bp), :] = h_new

    if static_unroll:
        # Short sequences: full unroll -> static slices, full LLO visibility.
        for t in range(T):
            step(t)
    else:
        def body(t, carry):
            step(t)
            return carry
        lax.fori_loop(0, T, body, 0)

    @pl.when(layer == num_layers - 1)
    def _():
        # Fused ReLU; Dropout(p=0.1) in eval mode is the identity.
        o_ref[0] = jnp.maximum(act_ref[...], 0.0).astype(o_ref.dtype)


def latent_forward(x_bdt, packed_params):
    """Full Latent.forward. x_bdt: (B, d_model, T) -> (B, d_model, T)."""
    w_ih, w_hh, b_gi, b_hn = packed_params
    B, D, T = x_bdt.shape
    L = w_ih.shape[0]

    # Batch padding / sharding: pad to the 8-sublane granule; use 2 shards on a
    # leading "parallel" grid axis when B is big enough (v7x megacore).
    nb = 2 if B > 8 else 1
    Bp = -(-B // (nb * 8)) * 8          # per-shard padded batch, multiple of 8
    Btot = nb * Bp

    # (B, D, T) -> time-major, batch-padded, shard-major 2-D slabs (nb, T*Bp, D).
    x = jnp.transpose(x_bdt, (2, 0, 1))                      # (T, B, D)
    x = jnp.pad(x, ((0, 0), (0, Btot - B), (0, 0)))          # zero-pad batch
    x = x.reshape(T, nb, Bp, D).transpose(1, 0, 2, 3).reshape(nb, T * Bp, D)

    kernel = functools.partial(_latent_kernel, T=T, Bp=Bp, D=D,
                               static_unroll=(T <= 64))

    out = pl.pallas_call(
        kernel,
        out_shape=jax.ShapeDtypeStruct((nb, T * Bp, D), x_bdt.dtype),
        grid_spec=pltpu.PrefetchScalarGridSpec(
            num_scalar_prefetch=0,
            grid=(nb, L),                                    # (batch shards, layers)
            in_specs=[
                pl.BlockSpec((1, T * Bp, D), lambda b, l: (b, 0, 0)),   # x shard
                pl.BlockSpec((1, D, 3 * D), lambda b, l: (l, 0, 0)),    # W_ih^T
                pl.BlockSpec((1, D, 3 * D), lambda b, l: (l, 0, 0)),    # W_hh^T
                pl.BlockSpec((1, 1, 3 * D), lambda b, l: (l, 0, 0)),    # b_gi
                pl.BlockSpec((1, 1, D), lambda b, l: (l, 0, 0)),        # b_hn
            ],
            out_specs=pl.BlockSpec((1, T * Bp, D), lambda b, l: (b, 0, 0)),
            scratch_shapes=[
                pltpu.VMEM((T * Bp, D), jnp.float32),        # activation slab
                pltpu.VMEM((T * Bp, 3 * D), jnp.float32),    # hoisted input proj
                pltpu.VMEM((Bp, D), jnp.float32),            # hidden state
            ],
        ),
        compiler_params=pltpu.CompilerParams(
            dimension_semantics=("parallel", "arbitrary")),
    )(x, w_ih, w_hh, b_gi, b_hn)

    # (nb, T*Bp, D) -> (B, D, T)
    out = out.reshape(nb, T, Bp, D).transpose(1, 0, 2, 3).reshape(T, Btot, D)
    return jnp.transpose(out[:, :B, :], (1, 2, 0))


def init_gru_params(key, d_model, num_layers):
    """PyTorch-layout nn.GRU params, gate order (r, z, n), init U(-1/sqrt(H), 1/sqrt(H)).

    Per layer: weight_ih (3D, D), weight_hh (3D, D), bias_ih (3D,), bias_hh (3D,).
    """
    bound = 1.0 / np.sqrt(d_model)
    params = []
    for _ in range(num_layers):
        key, k1, k2, k3, k4 = jax.random.split(key, 5)
        w_ih = jax.random.uniform(k1, (3 * d_model, d_model), jnp.float32, -bound, bound)
        w_hh = jax.random.uniform(k2, (3 * d_model, d_model), jnp.float32, -bound, bound)
        b_ih = jax.random.uniform(k3, (3 * d_model,), jnp.float32, -bound, bound)
        b_hh = jax.random.uniform(k4, (3 * d_model,), jnp.float32, -bound, bound)
        params.append((w_ih, w_hh, b_ih, b_hh))
    return params


def pack_params(params):
    """Repack PyTorch-layout GRU params into the kernel layout.

    Weights are transposed with the 3 gates concatenated on the lane axis
    ((D, 3D), lane-dense); b_hh's r/z components are pre-folded into the
    hoisted input-projection bias, leaving only b_hh_n for the per-step path.
    """
    D = params[0][0].shape[1]
    w_ih = jnp.stack([p[0].T for p in params])                        # (L, D, 3D)
    w_hh = jnp.stack([p[1].T for p in params])                        # (L, D, 3D)
    b_gi = jnp.stack([
        (p[2] + jnp.concatenate([p[3][:2 * D], jnp.zeros((D,), p[3].dtype)]))[None]
        for p in params])                                             # (L, 1, 3D)
    b_hn = jnp.stack([p[3][None, 2 * D:] for p in params])            # (L, 1, D)
    return w_ih, w_hh, b_gi, b_hn


def latent_reference(x_bdt, params):
    """Pure-JAX reference (lax.scan GRU, PyTorch gate equations) for correctness."""
    x = jnp.transpose(x_bdt, (0, 2, 1)).astype(jnp.float32)   # (B, T, D)
    B, T, D = x.shape
    for (w_ih, w_hh, b_ih, b_hh) in params:
        def step(h, x_t, w_ih=w_ih, w_hh=w_hh, b_ih=b_ih, b_hh=b_hh):
            gi = x_t @ w_ih.T + b_ih
            gh = h @ w_hh.T + b_hh
            r = jax.nn.sigmoid(gi[:, :D] + gh[:, :D])
            z = jax.nn.sigmoid(gi[:, D:2 * D] + gh[:, D:2 * D])
            n = jnp.tanh(gi[:, 2 * D:] + r * gh[:, 2 * D:])
            h_new = (1.0 - z) * n + z * h
            return h_new, h_new
        _, ys = lax.scan(step, jnp.zeros((B, D), jnp.float32),
                         jnp.transpose(x, (1, 0, 2)))
        x = jnp.transpose(ys, (1, 0, 2))
    return jnp.maximum(jnp.transpose(x, (0, 2, 1)), 0.0)


if __name__ == "__main__":
    B, D_MODEL, T = 2, 32, 8
    NUM_LAYERS = 4

    key = jax.random.PRNGKey(0)
    kx, kp = jax.random.split(key)
    x = jax.random.normal(kx, (B, D_MODEL, T), jnp.float32)  # (N, C, L) like PyTorch
    params = init_gru_params(kp, D_MODEL, NUM_LAYERS)
    packed = pack_params(params)

    out = jax.block_until_ready(latent_forward(x, packed))
    ref = jax.block_until_ready(latent_reference(x, params))

    assert out.shape == (B, D_MODEL, T)
    np.testing.assert_allclose(np.asarray(out), np.asarray(ref), rtol=1e-4, atol=1e-5)
    print("KERNEL_OK")
</pallas_src>

<mosaic_0001>
module attributes {stable_mosaic.version = 11 : i64} {
  func.func @_latent_kernel(%arg0: i32, %arg1: i32, %arg2: memref<1x64x32xf32, #tpu.memory_space<vmem>>, %arg3: memref<1x32x96xf32, #tpu.memory_space<vmem>>, %arg4: memref<1x32x96xf32, #tpu.memory_space<vmem>>, %arg5: memref<1x1x96xf32, #tpu.memory_space<vmem>>, %arg6: memref<1x1x32xf32, #tpu.memory_space<vmem>>, %arg7: memref<1x64x32xf32, #tpu.memory_space<vmem>>, %arg8: memref<64x32xf32, #tpu.memory_space<vmem>>, %arg9: memref<64x96xf32, #tpu.memory_space<vmem>>, %arg10: memref<8x32xf32, #tpu.memory_space<vmem>>) attributes {dimension_semantics = [#tpu.dimension_semantics<parallel>, #tpu.dimension_semantics<arbitrary>], iteration_bounds = array<i64: 1, 4>, scalar_prefetch = 0 : i64, scratch_operands = 3 : i64, tpu.core_type = #tpu.core_type<tc>, window_params = [{transform_indices = @transform_0, window_bounds = array<i64: 1, 64, 32>}, {transform_indices = @transform_1, window_bounds = array<i64: 1, 32, 96>}, {transform_indices = @transform_2, window_bounds = array<i64: 1, 32, 96>}, {transform_indices = @transform_3, window_bounds = array<i64: 1, 1, 96>}, {transform_indices = @transform_4, window_bounds = array<i64: 1, 1, 32>}, {transform_indices = @transform_5, window_bounds = array<i64: 1, 64, 32>}]} {
    %c0_i32 = arith.constant 0 : i32
    %0 = arith.cmpi eq, %arg1, %c0_i32 : i32
    %1 = arith.extui %0 : i1 to i32
    %c0_i32_0 = arith.constant 0 : i32
    %2 = arith.cmpi ne, %1, %c0_i32_0 : i32
    scf.if %2 {
      %c0_101 = arith.constant 0 : index
      %c0_102 = arith.constant 0 : index
      %c0_103 = arith.constant 0 : index
      %237 = vector.load %arg2[%c0_101, %c0_102, %c0_103] : memref<1x64x32xf32, #tpu.memory_space<vmem>>, vector<1x64x32xf32>
      %238 = vector.shape_cast %237 : vector<1x64x32xf32> to vector<64x32xf32>
      %c0_104 = arith.constant 0 : index
      %c0_105 = arith.constant 0 : index
      %239 = vector.load %arg8[%c0_104, %c0_105] : memref<64x32xf32, #tpu.memory_space<vmem>>, vector<64x32xf32>
      tpu.vector_store %arg8[%c0_104, %c0_105], %238 {strides = array<i32>} : memref<64x32xf32, #tpu.memory_space<vmem>>, vector<64x32xf32>,
    } else {
    }
    %c0 = arith.constant 0 : index
    %c0_1 = arith.constant 0 : index
    %c0_2 = arith.constant 0 : index
    %3 = vector.load %arg3[%c0, %c0_1, %c0_2] : memref<1x32x96xf32, #tpu.memory_space<vmem>>, vector<1x32x96xf32>
    %4 = vector.shape_cast %3 : vector<1x32x96xf32> to vector<32x96xf32>
    %c0_3 = arith.constant 0 : index
    %c0_4 = arith.constant 0 : index
    %c0_5 = arith.constant 0 : index
    %5 = vector.load %arg4[%c0_3, %c0_4, %c0_5] : memref<1x32x96xf32, #tpu.memory_space<vmem>>, vector<1x32x96xf32>
    %6 = vector.shape_cast %5 : vector<1x32x96xf32> to vector<32x96xf32>
    %c0_6 = arith.constant 0 : index
    %c0_7 = arith.constant 0 : index
    %c0_8 = arith.constant 0 : index
    %7 = vector.load %arg5[%c0_6, %c0_7, %c0_8] : memref<1x1x96xf32, #tpu.memory_space<vmem>>, vector<1x1x96xf32>
    %8 = vector.shape_cast %7 : vector<1x1x96xf32> to vector<1x96xf32>
    %c0_9 = arith.constant 0 : index
    %c0_10 = arith.constant 0 : index
    %c0_11 = arith.constant 0 : index
    %9 = vector.load %arg6[%c0_9, %c0_10, %c0_11] : memref<1x1x32xf32, #tpu.memory_space<vmem>>, vector<1x1x32xf32>
    %10 = vector.shape_cast %9 : vector<1x1x32xf32> to vector<1x32xf32>
    %c0_12 = arith.constant 0 : index
    %c0_13 = arith.constant 0 : index
    %11 = vector.load %arg8[%c0_12, %c0_13] : memref<64x32xf32, #tpu.memory_space<vmem>>, vector<64x32xf32>
    %cst = arith.constant dense<0.000000e+00> : vector<64x96xf32>
    %12 = tpu.matmul %11, %4, %cst {dimension_numbers = #tpu.dot_dimension_numbers<[1], [0], [0], [1], [0, 0, 1, 1], [], []>} : vector<64x32xf32>, vector<32x96xf32>, vector<64x96xf32> -> vector<64x96xf32>
    %13 = vector.broadcast %8 : vector<1x96xf32> to vector<64x96xf32>
    %14 = arith.addf %12, %13 : vector<64x96xf32>
    %c0_14 = arith.constant 0 : index
    %c0_15 = arith.constant 0 : index
    %15 = vector.load %arg9[%c0_14, %c0_15] : memref<64x96xf32, #tpu.memory_space<vmem>>, vector<64x96xf32>
    tpu.vector_store %arg9[%c0_14, %c0_15], %14 {strides = array<i32>} : memref<64x96xf32, #tpu.memory_space<vmem>>, vector<64x96xf32>,
    %cst_16 = arith.constant 0.000000e+00 : f32
    %16 = vector.broadcast %cst_16 : f32 to vector<8x32xf32>
    %c0_17 = arith.constant 0 : index
    %c0_18 = arith.constant 0 : index
    %17 = vector.load %arg10[%c0_17, %c0_18] : memref<8x32xf32, #tpu.memory_space<vmem>>, vector<8x32xf32>
    tpu.vector_store %arg10[%c0_17, %c0_18], %16 {strides = array<i32>} : memref<8x32xf32, #tpu.memory_space<vmem>>, vector<8x32xf32>,
    %c0_19 = arith.constant 0 : index
    %c0_20 = arith.constant 0 : index
    %18 = vector.load %arg9[%c0_19, %c0_20] : memref<64x96xf32, #tpu.memory_space<vmem>>, vector<8x96xf32>
    %c0_21 = arith.constant 0 : index
    %c0_22 = arith.constant 0 : index
    %19 = vector.load %arg10[%c0_21, %c0_22] : memref<8x32xf32, #tpu.memory_space<vmem>>, vector<8x32xf32>
    %cst_23 = arith.constant dense<0.000000e+00> : vector<8x96xf32>
    %20 = tpu.matmul %19, %6, %cst_23 {dimension_numbers = #tpu.dot_dimension_numbers<[1], [0], [0], [1], [0, 0, 1, 1], [], []>} : vector<8x32xf32>, vector<32x96xf32>, vector<8x96xf32> -> vector<8x96xf32>
    %21 = vector.extract_strided_slice %18 {offsets = [0, 0], sizes = [8, 64], strides = [1, 1]} : vector<8x96xf32> to vector<8x64xf32>
    %22 = vector.extract_strided_slice %20 {offsets = [0, 0], sizes = [8, 64], strides = [1, 1]} : vector<8x96xf32> to vector<8x64xf32>
    %23 = arith.addf %21, %22 : vector<8x64xf32>
    %24 = arith.negf %23 : vector<8x64xf32>
    %25 = math.exp %24 : vector<8x64xf32>
    %cst_24 = arith.constant 1.000000e+00 : f32
    %26 = vector.broadcast %cst_24 : f32 to vector<8x64xf32>
    %27 = arith.addf %26, %25 : vector<8x64xf32>
    %28 = arith.divf %26, %27 : vector<8x64xf32>
    %29 = vector.extract_strided_slice %28 {offsets = [0, 0], sizes = [8, 32], strides = [1, 1]} : vector<8x64xf32> to vector<8x32xf32>
    %30 = vector.extract_strided_slice %28 {offsets = [0, 32], sizes = [8, 32], strides = [1, 1]} : vector<8x64xf32> to vector<8x32xf32>
    %31 = vector.extract_strided_slice %18 {offsets = [0, 64], sizes = [8, 32], strides = [1, 1]} : vector<8x96xf32> to vector<8x32xf32>
    %32 = vector.extract_strided_slice %20 {offsets = [0, 64], sizes = [8, 32], strides = [1, 1]} : vector<8x96xf32> to vector<8x32xf32>
    %33 = vector.broadcast %10 : vector<1x32xf32> to vector<8x32xf32>
    %34 = arith.addf %32, %33 : vector<8x32xf32>
    %35 = arith.mulf %29, %34 : vector<8x32xf32>
    %36 = arith.addf %31, %35 : vector<8x32xf32>
    %37 = math.tanh %36 : vector<8x32xf32>
    %cst_25 = arith.constant 1.000000e+00 : f32
    %38 = vector.broadcast %cst_25 : f32 to vector<8x32xf32>
    %39 = arith.subf %38, %30 : vector<8x32xf32>
    %40 = arith.mulf %39, %37 : vector<8x32xf32>
    %41 = arith.mulf %30, %19 : vector<8x32xf32>
    %42 = arith.addf %40, %41 : vector<8x32xf32>
    %c0_26 = arith.constant 0 : index
    %c0_27 = arith.constant 0 : index
    %43 = vector.load %arg10[%c0_26, %c0_27] : memref<8x32xf32, #tpu.memory_space<vmem>>, vector<8x32xf32>
    tpu.vector_store %arg10[%c0_26, %c0_27], %42 {strides = array<i32>} : memref<8x32xf32, #tpu.memory_space<vmem>>, vector<8x32xf32>,
    %c0_28 = arith.constant 0 : index
    %c0_29 = arith.constant 0 : index
    %44 = vector.load %arg8[%c0_28, %c0_29] : memref<64x32xf32, #tpu.memory_space<vmem>>, vector<8x32xf32>
    tpu.vector_store %arg8[%c0_28, %c0_29], %42 {strides = array<i32>} : memref<64x32xf32, #tpu.memory_space<vmem>>, vector<8x32xf32>,
    %c8 = arith.constant 8 : index
    %c0_30 = arith.constant 0 : index
    %45 = vector.load %arg9[%c8, %c0_30] : memref<64x96xf32, #tpu.memory_space<vmem>>, vector<8x96xf32>
    %c0_31 = arith.constant 0 : index
    %c0_32 = arith.constant 0 : index
    %46 = vector.load %arg10[%c0_31, %c0_32] : memref<8x32xf32, #tpu.memory_space<vmem>>, vector<8x32xf32>
    %cst_33 = arith.constant dense<0.000000e+00> : vector<8x96xf32>
    %47 = tpu.matmul %46, %6, %cst_33 {dimension_numbers = #tpu.dot_dimension_numbers<[1], [0], [0], [1], [0, 0, 1, 1], [], []>} : vector<8x32xf32>, vector<32x96xf32>, vector<8x96xf32> -> vector<8x96xf32>
    %48 = vector.extract_strided_slice %45 {offsets = [0, 0], sizes = [8, 64], strides = [1, 1]} : vector<8x96xf32> to vector<8x64xf32>
    %49 = vector.extract_strided_slice %47 {offsets = [0, 0], sizes = [8, 64], strides = [1, 1]} : vector<8x96xf32> to vector<8x64xf32>
    %50 = arith.addf %48, %49 : vector<8x64xf32>
    %51 = arith.negf %50 : vector<8x64xf32>
    %52 = math.exp %51 : vector<8x64xf32>
    %cst_34 = arith.constant 1.000000e+00 : f32
    %53 = vector.broadcast %cst_34 : f32 to vector<8x64xf32>
    %54 = arith.addf %53, %52 : vector<8x64xf32>
    %55 = arith.divf %53, %54 : vector<8x64xf32>
    %56 = vector.extract_strided_slice %55 {offsets = [0, 0], sizes = [8, 32], strides = [1, 1]} : vector<8x64xf32> to vector<8x32xf32>
    %57 = vector.extract_strided_slice %55 {offsets = [0, 32], sizes = [8, 32], strides = [1, 1]} : vector<8x64xf32> to vector<8x32xf32>
    %58 = vector.extract_strided_slice %45 {offsets = [0, 64], sizes = [8, 32], strides = [1, 1]} : vector<8x96xf32> to vector<8x32xf32>
    %59 = vector.extract_strided_slice %47 {offsets = [0, 64], sizes = [8, 32], strides = [1, 1]} : vector<8x96xf32> to vector<8x32xf32>
    %60 = vector.broadcast %10 : vector<1x32xf32> to vector<8x32xf32>
    %61 = arith.addf %59, %60 : vector<8x32xf32>
    %62 = arith.mulf %56, %61 : vector<8x32xf32>
    %63 = arith.addf %58, %62 : vector<8x32xf32>
    %64 = math.tanh %63 : vector<8x32xf32>
    %cst_35 = arith.constant 1.000000e+00 : f32
    %65 = vector.broadcast %cst_35 : f32 to vector<8x32xf32>
    %66 = arith.subf %65, %57 : vector<8x32xf32>
    %67 = arith.mulf %66, %64 : vector<8x32xf32>
    %68 = arith.mulf %57, %46 : vector<8x32xf32>
    %69 = arith.addf %67, %68 : vector<8x32xf32>
    %c0_36 = arith.constant 0 : index
    %c0_37 = arith.constant 0 : index
    %70 = vector.load %arg10[%c0_36, %c0_37] : memref<8x32xf32, #tpu.memory_space<vmem>>, vector<8x32xf32>
    tpu.vector_store %arg10[%c0_36, %c0_37], %69 {strides = array<i32>} : memref<8x32xf32, #tpu.memory_space<vmem>>, vector<8x32xf32>,
    %c8_38 = arith.constant 8 : index
    %c0_39 = arith.constant 0 : index
    %71 = vector.load %arg8[%c8_38, %c0_39] : memref<64x32xf32, #tpu.memory_space<vmem>>, vector<8x32xf32>
    tpu.vector_store %arg8[%c8_38, %c0_39], %69 {strides = array<i32>} : memref<64x32xf32, #tpu.memory_space<vmem>>, vector<8x32xf32>,
    %c16 = arith.constant 16 : index
    %c0_40 = arith.constant 0 : index
    %72 = vector.load %arg9[%c16, %c0_40] : memref<64x96xf32, #tpu.memory_space<vmem>>, vector<8x96xf32>
    %c0_41 = arith.constant 0 : index
    %c0_42 = arith.constant 0 : index
    %73 = vector.load %arg10[%c0_41, %c0_42] : memref<8x32xf32, #tpu.memory_space<vmem>>, vector<8x32xf32>
    %cst_43 = arith.constant dense<0.000000e+00> : vector<8x96xf32>
    %74 = tpu.matmul %73, %6, %cst_43 {dimension_numbers = #tpu.dot_dimension_numbers<[1], [0], [0], [1], [0, 0, 1, 1], [], []>} : vector<8x32xf32>, vector<32x96xf32>, vector<8x96xf32> -> vector<8x96xf32>
    %75 = vector.extract_strided_slice %72 {offsets = [0, 0], sizes = [8, 64], strides = [1, 1]} : vector<8x96xf32> to vector<8x64xf32>
    %76 = vector.extract_strided_slice %74 {offsets = [0, 0], sizes = [8, 64], strides = [1, 1]} : vector<8x96xf32> to vector<8x64xf32>
    %77 = arith.addf %75, %76 : vector<8x64xf32>
    %78 = arith.negf %77 : vector<8x64xf32>
    %79 = math.exp %78 : vector<8x64xf32>
    %cst_44 = arith.constant 1.000000e+00 : f32
    %80 = vector.broadcast %cst_44 : f32 to vector<8x64xf32>
    %81 = arith.addf %80, %79 : vector<8x64xf32>
    %82 = arith.divf %80, %81 : vector<8x64xf32>
    %83 = vector.extract_strided_slice %82 {offsets = [0, 0], sizes = [8, 32], strides = [1, 1]} : vector<8x64xf32> to vector<8x32xf32>
    %84 = vector.extract_strided_slice %82 {offsets = [0, 32], sizes = [8, 32], strides = [1, 1]} : vector<8x64xf32> to vector<8x32xf32>
    %85 = vector.extract_strided_slice %72 {offsets = [0, 64], sizes = [8, 32], strides = [1, 1]} : vector<8x96xf32> to vector<8x32xf32>
    %86 = vector.extract_strided_slice %74 {offsets = [0, 64], sizes = [8, 32], strides = [1, 1]} : vector<8x96xf32> to vector<8x32xf32>
    %87 = vector.broadcast %10 : vector<1x32xf32> to vector<8x32xf32>
    %88 = arith.addf %86, %87 : vector<8x32xf32>
    %89 = arith.mulf %83, %88 : vector<8x32xf32>
    %90 = arith.addf %85, %89 : vector<8x32xf32>
    %91 = math.tanh %90 : vector<8x32xf32>
    %cst_45 = arith.constant 1.000000e+00 : f32
    %92 = vector.broadcast %cst_45 : f32 to vector<8x32xf32>
    %93 = arith.subf %92, %84 : vector<8x32xf32>
    %94 = arith.mulf %93, %91 : vector<8x32xf32>
    %95 = arith.mulf %84, %73 : vector<8x32xf32>
    %96 = arith.addf %94, %95 : vector<8x32xf32>
    %c0_46 = arith.constant 0 : index
    %c0_47 = arith.constant 0 : index
    %97 = vector.load %arg10[%c0_46, %c0_47] : memref<8x32xf32, #tpu.memory_space<vmem>>, vector<8x32xf32>
    tpu.vector_store %arg10[%c0_46, %c0_47], %96 {strides = array<i32>} : memref<8x32xf32, #tpu.memory_space<vmem>>, vector<8x32xf32>,
    %c16_48 = arith.constant 16 : index
    %c0_49 = arith.constant 0 : index
    %98 = vector.load %arg8[%c16_48, %c0_49] : memref<64x32xf32, #tpu.memory_space<vmem>>, vector<8x32xf32>
    tpu.vector_store %arg8[%c16_48, %c0_49], %96 {strides = array<i32>} : memref<64x32xf32, #tpu.memory_space<vmem>>, vector<8x32xf32>,
    %c24 = arith.constant 24 : index
    %c0_50 = arith.constant 0 : index
    %99 = vector.load %arg9[%c24, %c0_50] : memref<64x96xf32, #tpu.memory_space<vmem>>, vector<8x96xf32>
    %c0_51 = arith.constant 0 : index
    %c0_52 = arith.constant 0 : index
    %100 = vector.load %arg10[%c0_51, %c0_52] : memref<8x32xf32, #tpu.memory_space<vmem>>, vector<8x32xf32>
    %cst_53 = arith.constant dense<0.000000e+00> : vector<8x96xf32>
    %101 = tpu.matmul %100, %6, %cst_53 {dimension_numbers = #tpu.dot_dimension_numbers<[1], [0], [0], [1], [0, 0, 1, 1], [], []>} : vector<8x32xf32>, vector<32x96xf32>, vector<8x96xf32> -> vector<8x96xf32>
    %102 = vector.extract_strided_slice %99 {offsets = [0, 0], sizes = [8, 64], strides = [1, 1]} : vector<8x96xf32> to vector<8x64xf32>
    %103 = vector.extract_strided_slice %101 {offsets = [0, 0], sizes = [8, 64], strides = [1, 1]} : vector<8x96xf32> to vector<8x64xf32>
    %104 = arith.addf %102, %103 : vector<8x64xf32>
    %105 = arith.negf %104 : vector<8x64xf32>
    %106 = math.exp %105 : vector<8x64xf32>
    %cst_54 = arith.constant 1.000000e+00 : f32
    %107 = vector.broadcast %cst_54 : f32 to vector<8x64xf32>
    %108 = arith.addf %107, %106 : vector<8x64xf32>
    %109 = arith.divf %107, %108 : vector<8x64xf32>
    %110 = vector.extract_strided_slice %109 {offsets = [0, 0], sizes = [8, 32], strides = [1, 1]} : vector<8x64xf32> to vector<8x32xf32>
    %111 = vector.extract_strided_slice %109 {offsets = [0, 32], sizes = [8, 32], strides = [1, 1]} : vector<8x64xf32> to vector<8x32xf32>
    %112 = vector.extract_strided_slice %99 {offsets = [0, 64], sizes = [8, 32], strides = [1, 1]} : vector<8x96xf32> to vector<8x32xf32>
    %113 = vector.extract_strided_slice %101 {offsets = [0, 64], sizes = [8, 32], strides = [1, 1]} : vector<8x96xf32> to vector<8x32xf32>
    %114 = vector.broadcast %10 : vector<1x32xf32> to vector<8x32xf32>
    %115 = arith.addf %113, %114 : vector<8x32xf32>
    %116 = arith.mulf %110, %115 : vector<8x32xf32>
    %117 = arith.addf %112, %116 : vector<8x32xf32>
    %118 = math.tanh %117 : vector<8x32xf32>
    %cst_55 = arith.constant 1.000000e+00 : f32
    %119 = vector.broadcast %cst_55 : f32 to vector<8x32xf32>
    %120 = arith.subf %119, %111 : vector<8x32xf32>
    %121 = arith.mulf %120, %118 : vector<8x32xf32>
    %122 = arith.mulf %111, %100 : vector<8x32xf32>
    %123 = arith.addf %121, %122 : vector<8x32xf32>
    %c0_56 = arith.constant 0 : index
    %c0_57 = arith.constant 0 : index
    %124 = vector.load %arg10[%c0_56, %c0_57] : memref<8x32xf32, #tpu.memory_space<vmem>>, vector<8x32xf32>
    tpu.vector_store %arg10[%c0_56, %c0_57], %123 {strides = array<i32>} : memref<8x32xf32, #tpu.memory_space<vmem>>, vector<8x32xf32>,
    %c24_58 = arith.constant 24 : index
    %c0_59 = arith.constant 0 : index
    %125 = vector.load %arg8[%c24_58, %c0_59] : memref<64x32xf32, #tpu.memory_space<vmem>>, vector<8x32xf32>
    tpu.vector_store %arg8[%c24_58, %c0_59], %123 {strides = array<i32>} : memref<64x32xf32, #tpu.memory_space<vmem>>, vector<8x32xf32>,
    %c32 = arith.constant 32 : index
    %c0_60 = arith.constant 0 : index
    %126 = vector.load %arg9[%c32, %c0_60] : memref<64x96xf32, #tpu.memory_space<vmem>>, vector<8x96xf32>
    %c0_61 = arith.constant 0 : index
    %c0_62 = arith.constant 0 : index
    %127 = vector.load %arg10[%c0_61, %c0_62] : memref<8x32xf32, #tpu.memory_space<vmem>>, vector<8x32xf32>
    %cst_63 = arith.constant dense<0.000000e+00> : vector<8x96xf32>
    %128 = tpu.matmul %127, %6, %cst_63 {dimension_numbers = #tpu.dot_dimension_numbers<[1], [0], [0], [1], [0, 0, 1, 1], [], []>} : vector<8x32xf32>, vector<32x96xf32>, vector<8x96xf32> -> vector<8x96xf32>
    %129 = vector.extract_strided_slice %126 {offsets = [0, 0], sizes = [8, 64], strides = [1, 1]} : vector<8x96xf32> to vector<8x64xf32>
    %130 = vector.extract_strided_slice %128 {offsets = [0, 0], sizes = [8, 64], strides = [1, 1]} : vector<8x96xf32> to vector<8x64xf32>
    %131 = arith.addf %129, %130 : vector<8x64xf32>
    %132 = arith.negf %131 : vector<8x64xf32>
    %133 = math.exp %132 : vector<8x64xf32>
    %cst_64 = arith.constant 1.000000e+00 : f32
    %134 = vector.broadcast %cst_64 : f32 to vector<8x64xf32>
    %135 = arith.addf %134, %133 : vector<8x64xf32>
    %136 = arith.divf %134, %135 : vector<8x64xf32>
    %137 = vector.extract_strided_slice %136 {offsets = [0, 0], sizes = [8, 32], strides = [1, 1]} : vector<8x64xf32> to vector<8x32xf32>
    %138 = vector.extract_strided_slice %136 {offsets = [0, 32], sizes = [8, 32], strides = [1, 1]} : vector<8x64xf32> to vector<8x32xf32>
    %139 = vector.extract_strided_slice %126 {offsets = [0, 64], sizes = [8, 32], strides = [1, 1]} : vector<8x96xf32> to vector<8x32xf32>
    %140 = vector.extract_strided_slice %128 {offsets = [0, 64], sizes = [8, 32], strides = [1, 1]} : vector<8x96xf32> to vector<8x32xf32>
    %141 = vector.broadcast %10 : vector<1x32xf32> to vector<8x32xf32>
    %142 = arith.addf %140, %141 : vector<8x32xf32>
    %143 = arith.mulf %137, %142 : vector<8x32xf32>
    %144 = arith.addf %139, %143 : vector<8x32xf32>
    %145 = math.tanh %144 : vector<8x32xf32>
    %cst_65 = arith.constant 1.000000e+00 : f32
    %146 = vector.broadcast %cst_65 : f32 to vector<8x32xf32>
    %147 = arith.subf %146, %138 : vector<8x32xf32>
    %148 = arith.mulf %147, %145 : vector<8x32xf32>
    %149 = arith.mulf %138, %127 : vector<8x32xf32>
    %150 = arith.addf %148, %149 : vector<8x32xf32>
    %c0_66 = arith.constant 0 : index
    %c0_67 = arith.constant 0 : index
    %151 = vector.load %arg10[%c0_66, %c0_67] : memref<8x32xf32, #tpu.memory_space<vmem>>, vector<8x32xf32>
    tpu.vector_store %arg10[%c0_66, %c0_67], %150 {strides = array<i32>} : memref<8x32xf32, #tpu.memory_space<vmem>>, vector<8x32xf32>,
    %c32_68 = arith.constant 32 : index
    %c0_69 = arith.constant 0 : index
    %152 = vector.load %arg8[%c32_68, %c0_69] : memref<64x32xf32, #tpu.memory_space<vmem>>, vector<8x32xf32>
    tpu.vector_store %arg8[%c32_68, %c0_69], %150 {strides = array<i32>} : memref<64x32xf32, #tpu.memory_space<vmem>>, vector<8x32xf32>,
    %c40 = arith.constant 40 : index
    %c0_70 = arith.constant 0 : index
    %153 = vector.load %arg9[%c40, %c0_70] : memref<64x96xf32, #tpu.memory_space<vmem>>, vector<8x96xf32>
    %c0_71 = arith.constant 0 : index
    %c0_72 = arith.constant 0 : index
    %154 = vector.load %arg10[%c0_71, %c0_72] : memref<8x32xf32, #tpu.memory_space<vmem>>, vector<8x32xf32>
    %cst_73 = arith.constant dense<0.000000e+00> : vector<8x96xf32>
    %155 = tpu.matmul %154, %6, %cst_73 {dimension_numbers = #tpu.dot_dimension_numbers<[1], [0], [0], [1], [0, 0, 1, 1], [], []>} : vector<8x32xf32>, vector<32x96xf32>, vector<8x96xf32> -> vector<8x96xf32>
    %156 = vector.extract_strided_slice %153 {offsets = [0, 0], sizes = [8, 64], strides = [1, 1]} : vector<8x96xf32> to vector<8x64xf32>
    %157 = vector.extract_strided_slice %155 {offsets = [0, 0], sizes = [8, 64], strides = [1, 1]} : vector<8x96xf32> to vector<8x64xf32>
    %158 = arith.addf %156, %157 : vector<8x64xf32>
    %159 = arith.negf %158 : vector<8x64xf32>
    %160 = math.exp %159 : vector<8x64xf32>
    %cst_74 = arith.constant 1.000000e+00 : f32
    %161 = vector.broadcast %cst_74 : f32 to vector<8x64xf32>
    %162 = arith.addf %161, %160 : vector<8x64xf32>
    %163 = arith.divf %161, %162 : vector<8x64xf32>
    %164 = vector.extract_strided_slice %163 {offsets = [0, 0], sizes = [8, 32], strides = [1, 1]} : vector<8x64xf32> to vector<8x32xf32>
    %165 = vector.extract_strided_slice %163 {offsets = [0, 32], sizes = [8, 32], strides = [1, 1]} : vector<8x64xf32> to vector<8x32xf32>
    %166 = vector.extract_strided_slice %153 {offsets = [0, 64], sizes = [8, 32], strides = [1, 1]} : vector<8x96xf32> to vector<8x32xf32>
    %167 = vector.extract_strided_slice %155 {offsets = [0, 64], sizes = [8, 32], strides = [1, 1]} : vector<8x96xf32> to vector<8x32xf32>
    %168 = vector.broadcast %10 : vector<1x32xf32> to vector<8x32xf32>
    %169 = arith.addf %167, %168 : vector<8x32xf32>
    %170 = arith.mulf %164, %169 : vector<8x32xf32>
    %171 = arith.addf %166, %170 : vector<8x32xf32>
    %172 = math.tanh %171 : vector<8x32xf32>
    %cst_75 = arith.constant 1.000000e+00 : f32
    %173 = vector.broadcast %cst_75 : f32 to vector<8x32xf32>
    %174 = arith.subf %173, %165 : vector<8x32xf32>
    %175 = arith.mulf %174, %172 : vector<8x32xf32>
    %176 = arith.mulf %165, %154 : vector<8x32xf32>
    %177 = arith.addf %175, %176 : vector<8x32xf32>
    %c0_76 = arith.constant 0 : index
    %c0_77 = arith.constant 0 : index
    %178 = vector.load %arg10[%c0_76, %c0_77] : memref<8x32xf32, #tpu.memory_space<vmem>>, vector<8x32xf32>
    tpu.vector_store %arg10[%c0_76, %c0_77], %177 {strides = array<i32>} : memref<8x32xf32, #tpu.memory_space<vmem>>, vector<8x32xf32>,
    %c40_78 = arith.constant 40 : index
    %c0_79 = arith.constant 0 : index
    %179 = vector.load %arg8[%c40_78, %c0_79] : memref<64x32xf32, #tpu.memory_space<vmem>>, vector<8x32xf32>
    tpu.vector_store %arg8[%c40_78, %c0_79], %177 {strides = array<i32>} : memref<64x32xf32, #tpu.memory_space<vmem>>, vector<8x32xf32>,
    %c48 = arith.constant 48 : index
    %c0_80 = arith.constant 0 : index
    %180 = vector.load %arg9[%c48, %c0_80] : memref<64x96xf32, #tpu.memory_space<vmem>>, vector<8x96xf32>
    %c0_81 = arith.constant 0 : index
    %c0_82 = arith.constant 0 : index
    %181 = vector.load %arg10[%c0_81, %c0_82] : memref<8x32xf32, #tpu.memory_space<vmem>>, vector<8x32xf32>
    %cst_83 = arith.constant dense<0.000000e+00> : vector<8x96xf32>
    %182 = tpu.matmul %181, %6, %cst_83 {dimension_numbers = #tpu.dot_dimension_numbers<[1], [0], [0], [1], [0, 0, 1, 1], [], []>} : vector<8x32xf32>, vector<32x96xf32>, vector<8x96xf32> -> vector<8x96xf32>
    %183 = vector.extract_strided_slice %180 {offsets = [0, 0], sizes = [8, 64], strides = [1, 1]} : vector<8x96xf32> to vector<8x64xf32>
    %184 = vector.extract_strided_slice %182 {offsets = [0, 0], sizes = [8, 64], strides = [1, 1]} : vector<8x96xf32> to vector<8x64xf32>
    %185 = arith.addf %183, %184 : vector<8x64xf32>
    %186 = arith.negf %185 : vector<8x64xf32>
    %187 = math.exp %186 : vector<8x64xf32>
    %cst_84 = arith.constant 1.000000e+00 : f32
    %188 = vector.broadcast %cst_84 : f32 to vector<8x64xf32>
    %189 = arith.addf %188, %187 : vector<8x64xf32>
    %190 = arith.divf %188, %189 : vector<8x64xf32>
    %191 = vector.extract_strided_slice %190 {offsets = [0, 0], sizes = [8, 32], strides = [1, 1]} : vector<8x64xf32> to vector<8x32xf32>
    %192 = vector.extract_strided_slice %190 {offsets = [0, 32], sizes = [8, 32], strides = [1, 1]} : vector<8x64xf32> to vector<8x32xf32>
    %193 = vector.extract_strided_slice %180 {offsets = [0, 64], sizes = [8, 32], strides = [1, 1]} : vector<8x96xf32> to vector<8x32xf32>
    %194 = vector.extract_strided_slice %182 {offsets = [0, 64], sizes = [8, 32], strides = [1, 1]} : vector<8x96xf32> to vector<8x32xf32>
    %195 = vector.broadcast %10 : vector<1x32xf32> to vector<8x32xf32>
    %196 = arith.addf %194, %195 : vector<8x32xf32>
    %197 = arith.mulf %191, %196 : vector<8x32xf32>
    %198 = arith.addf %193, %197 : vector<8x32xf32>
    %199 = math.tanh %198 : vector<8x32xf32>
    %cst_85 = arith.constant 1.000000e+00 : f32
    %200 = vector.broadcast %cst_85 : f32 to vector<8x32xf32>
    %201 = arith.subf %200, %192 : vector<8x32xf32>
    %202 = arith.mulf %201, %199 : vector<8x32xf32>
    %203 = arith.mulf %192, %181 : vector<8x32xf32>
    %204 = arith.addf %202, %203 : vector<8x32xf32>
    %c0_86 = arith.constant 0 : index
    %c0_87 = arith.constant 0 : index
    %205 = vector.load %arg10[%c0_86, %c0_87] : memref<8x32xf32, #tpu.memory_space<vmem>>, vector<8x32xf32>
    tpu.vector_store %arg10[%c0_86, %c0_87], %204 {strides = array<i32>} : memref<8x32xf32, #tpu.memory_space<vmem>>, vector<8x32xf32>,
    %c48_88 = arith.constant 48 : index
    %c0_89 = arith.constant 0 : index
    %206 = vector.load %arg8[%c48_88, %c0_89] : memref<64x32xf32, #tpu.memory_space<vmem>>, vector<8x32xf32>
    tpu.vector_store %arg8[%c48_88, %c0_89], %204 {strides = array<i32>} : memref<64x32xf32, #tpu.memory_space<vmem>>, vector<8x32xf32>,
    %c56 = arith.constant 56 : index
    %c0_90 = arith.constant 0 : index
    %207 = vector.load %arg9[%c56, %c0_90] : memref<64x96xf32, #tpu.memory_space<vmem>>, vector<8x96xf32>
    %c0_91 = arith.constant 0 : index
    %c0_92 = arith.constant 0 : index
    %208 = vector.load %arg10[%c0_91, %c0_92] : memref<8x32xf32, #tpu.memory_space<vmem>>, vector<8x32xf32>
    %cst_93 = arith.constant dense<0.000000e+00> : vector<8x96xf32>
    %209 = tpu.matmul %208, %6, %cst_93 {dimension_numbers = #tpu.dot_dimension_numbers<[1], [0], [0], [1], [0, 0, 1, 1], [], []>} : vector<8x32xf32>, vector<32x96xf32>, vector<8x96xf32> -> vector<8x96xf32>
    %210 = vector.extract_strided_slice %207 {offsets = [0, 0], sizes = [8, 64], strides = [1, 1]} : vector<8x96xf32> to vector<8x64xf32>
    %211 = vector.extract_strided_slice %209 {offsets = [0, 0], sizes = [8, 64], strides = [1, 1]} : vector<8x96xf32> to vector<8x64xf32>
    %212 = arith.addf %210, %211 : vector<8x64xf32>
    %213 = arith.negf %212 : vector<8x64xf32>
    %214 = math.exp %213 : vector<8x64xf32>
    %cst_94 = arith.constant 1.000000e+00 : f32
    %215 = vector.broadcast %cst_94 : f32 to vector<8x64xf32>
    %216 = arith.addf %215, %214 : vector<8x64xf32>
    %217 = arith.divf %215, %216 : vector<8x64xf32>
    %218 = vector.extract_strided_slice %217 {offsets = [0, 0], sizes = [8, 32], strides = [1, 1]} : vector<8x64xf32> to vector<8x32xf32>
    %219 = vector.extract_strided_slice %217 {offsets = [0, 32], sizes = [8, 32], strides = [1, 1]} : vector<8x64xf32> to vector<8x32xf32>
    %220 = vector.extract_strided_slice %207 {offsets = [0, 64], sizes = [8, 32], strides = [1, 1]} : vector<8x96xf32> to vector<8x32xf32>
    %221 = vector.extract_strided_slice %209 {offsets = [0, 64], sizes = [8, 32], strides = [1, 1]} : vector<8x96xf32> to vector<8x32xf32>
    %222 = vector.broadcast %10 : vector<1x32xf32> to vector<8x32xf32>
    %223 = arith.addf %221, %222 : vector<8x32xf32>
    %224 = arith.mulf %218, %223 : vector<8x32xf32>
    %225 = arith.addf %220, %224 : vector<8x32xf32>
    %226 = math.tanh %225 : vector<8x32xf32>
    %cst_95 = arith.constant 1.000000e+00 : f32
    %227 = vector.broadcast %cst_95 : f32 to vector<8x32xf32>
    %228 = arith.subf %227, %219 : vector<8x32xf32>
    %229 = arith.mulf %228, %226 : vector<8x32xf32>
    %230 = arith.mulf %219, %208 : vector<8x32xf32>
    %231 = arith.addf %229, %230 : vector<8x32xf32>
    %c0_96 = arith.constant 0 : index
    %c0_97 = arith.constant 0 : index
    %232 = vector.load %arg10[%c0_96, %c0_97] : memref<8x32xf32, #tpu.memory_space<vmem>>, vector<8x32xf32>
    tpu.vector_store %arg10[%c0_96, %c0_97], %231 {strides = array<i32>} : memref<8x32xf32, #tpu.memory_space<vmem>>, vector<8x32xf32>,
    %c56_98 = arith.constant 56 : index
    %c0_99 = arith.constant 0 : index
    %233 = vector.load %arg8[%c56_98, %c0_99] : memref<64x32xf32, #tpu.memory_space<vmem>>, vector<8x32xf32>
    tpu.vector_store %arg8[%c56_98, %c0_99], %231 {strides = array<i32>} : memref<64x32xf32, #tpu.memory_space<vmem>>, vector<8x32xf32>,
    %c3_i32 = arith.constant 3 : i32
    %234 = arith.cmpi eq, %arg1, %c3_i32 : i32
    %235 = arith.extui %234 : i1 to i32
    %c0_i32_100 = arith.constant 0 : i32
    %236 = arith.cmpi ne, %235, %c0_i32_100 : i32
    scf.if %236 {
      %c0_101 = arith.constant 0 : index
      %c0_102 = arith.constant 0 : index
      %237 = vector.load %arg8[%c0_101, %c0_102] : memref<64x32xf32, #tpu.memory_space<vmem>>, vector<64x32xf32>
      %cst_103 = arith.constant 0.000000e+00 : f32
      %238 = vector.broadcast %cst_103 : f32 to vector<64x32xf32>
      %239 = arith.maximumf %237, %238 : vector<64x32xf32>
      %c0_104 = arith.constant 0 : index
      %c0_105 = arith.constant 0 : index
      %c0_106 = arith.constant 0 : index
      %240 = vector.load %arg7[%c0_104, %c0_105, %c0_106] : memref<1x64x32xf32, #tpu.memory_space<vmem>>, vector<1x64x32xf32>
      %241 = vector.shape_cast %240 : vector<1x64x32xf32> to vector<64x32xf32>
      %242 = vector.shape_cast %239 : vector<64x32xf32> to vector<1x64x32xf32>
      tpu.vector_store %arg7[%c0_104, %c0_105, %c0_106], %242 {strides = array<i32>} : memref<1x64x32xf32, #tpu.memory_space<vmem>>, vector<1x64x32xf32>,
    } else {
    }
    return
  }
  func.func @transform_0(%arg0: i32, %arg1: i32) -> (i32, i32, i32) {
    %c0_i32 = arith.constant 0 : i32
    %c0_i32_0 = arith.constant 0 : i32
    %c0_i32_1 = arith.constant 0 : i32
    return %arg0, %c0_i32, %c0_i32_0 : i32, i32, i32
  }
  func.func @transform_1(%arg0: i32, %arg1: i32) -> (i32, i32, i32) {
    %c0_i32 = arith.constant 0 : i32
    %c0_i32_0 = arith.constant 0 : i32
    %c0_i32_1 = arith.constant 0 : i32
    return %arg1, %c0_i32, %c0_i32_0 : i32, i32, i32
  }
  func.func @transform_2(%arg0: i32, %arg1: i32) -> (i32, i32, i32) {
    %c0_i32 = arith.constant 0 : i32
    %c0_i32_0 = arith.constant 0 : i32
    %c0_i32_1 = arith.constant 0 : i32
    return %arg1, %c0_i32, %c0_i32_0 : i32, i32, i32
  }
  func.func @transform_3(%arg0: i32, %arg1: i32) -> (i32, i32, i32) {
    %c0_i32 = arith.constant 0 : i32
    %c0_i32_0 = arith.constant 0 : i32
    %c0_i32_1 = arith.constant 0 : i32
    return %arg1, %c0_i32, %c0_i32_0 : i32, i32, i32
  }
  func.func @transform_4(%arg0: i32, %arg1: i32) -> (i32, i32, i32) {
    %c0_i32 = arith.constant 0 : i32
    %c0_i32_0 = arith.constant 0 : i32
    %c0_i32_1 = arith.constant 0 : i32
    return %arg1, %c0_i32, %c0_i32_0 : i32, i32, i32
  }
  func.func @transform_5(%arg0: i32, %arg1: i32) -> (i32, i32, i32) {
    %c0_i32 = arith.constant 0 : i32
    %c0_i32_0 = arith.constant 0 : i32
    %c0_i32_1 = arith.constant 0 : i32
    return %arg0, %c0_i32, %c0_i32_0 : i32, i32, i32
  }
}

</mosaic_0001>

<llo_original>
// kernel: tpu_custom_call.1
$region0: #{tpu_custom_call.1}
  #allocation0 [shape = 'u32[]', space=smem, size = 0x4, offset = 0x4, fixed_abs, tag = 'smem constant byte address 0x4 - core index']
  #allocation1 [shape = 'u32[144,128]{1,0:T(1,128)}', space=vmem, size = 0x12000, scoped, tag = 'internal scratch']
  #allocation2 [shape = 'f32[64,32]{1,0:T(8,128)}', space=vmem, size = 0x8000, scoped, tag = 'scratch operand']
  #allocation3 [shape = 'f32[64,96]{1,0:T(8,128)}', space=vmem, size = 0x8000, scoped, tag = 'scratch operand']
  #allocation4 [shape = 'f32[8,32]{1,0:T(8,128)}', space=vmem, size = 0x1000, scoped, tag = 'scratch operand']
  %s0 = inlined_call_operand.vmem [shape: f32[1,64,32], index: 0, kind: input, shape index: {}]
  %s1 = inlined_call_operand.hbm [shape: f32[4,32,96], index: 1, kind: input, shape index: {}]
  %s2 = inlined_call_operand.hbm [shape: f32[4,32,96], index: 2, kind: input, shape index: {}]
  %s3 = inlined_call_operand.vmem [shape: f32[4,1,96], index: 3, kind: input, shape index: {}]
  %s4 = inlined_call_operand.vmem [shape: f32[4,1,32], index: 4, kind: input, shape index: {}]
  %s5 = inlined_call_operand.vmem [shape: f32[1,64,32], index: 5, kind: output, shape index: {}]
  %s6 = sld [smem:[#allocation0]]
  $region69: #{tpu_custom_call.1} parent=0
    _
  %s8 = ssub.s32 1, %s6
  %s9 = scalar_select 0, %s8, %s6
  $region1: #{tpu_custom_call.1} parent=0
    #allocation5 [shape = 'u8[32768]{0}', space=vmem, size = 0x8000, scoped, tag = 'input window, operand 1']
    #allocation6 [shape = 's32[2]{0}', space=sflag, size = 0x8, scoped, tag = 'scoped memory for tpu_custom_call.1']
    #allocation7 [shape = 'u8[32768]{0}', space=vmem, size = 0x8000, scoped, tag = 'input window, operand 2']
    #allocation8 [shape = 's32[2]{0}', space=sflag, size = 0x8, scoped, tag = 'scoped memory for tpu_custom_call.1']
    %10 = vsyncpa [#allocation6], 0
    %s11 = scalar_lea.sflag [#allocation6], 1
    %12 = vsyncpa %s11, 0
    %13 = vsyncpa [#allocation8], 0
    %s14 = scalar_lea.sflag [#allocation8], 1
    %15 = vsyncpa %s14, 0
    loop: start=0, step=1, limit=6
    $region2: #{tpu_custom_call.1} parent=1 // loop_pre_header
      _
    $region3: #{tpu_custom_call.1} parent=1 // loop_header
      %s17 = sphi 0, %s21
      %p18 = scmp.ge.s32.totalorder %s17, 6
      %s24 = sphi 0, %s36
      %s25 = sphi 0, %s32
      %s26 = sphi 0, %s24
      %s27 = sphi 0, %s25
      %s28 = sphi 0, %s26
      %s29 = sphi 0, %s27
      %s39 = sphi 0, %s41
      %s42 = sphi 0, %s39
      %s43 = sphi 0, %s42
      %s59 = sphi 0, %s43
      %s65 = sphi 0, %s67
      %s68 = sphi 0, %s65
      %s69 = sphi 0, %s68
      %s85 = sphi 0, %s69
      %s91 = sphi 0, %s93
      %s94 = sphi 0, %s91
      %s95 = sphi 0, %s94
      %s111 = sphi 0, %s95
      %s117 = sphi 0, %s119
      %s120 = sphi 0, %s117
      %s121 = sphi 0, %s120
      %s137 = sphi 0, %s121
      %s143 = sphi 0, %s145
      %s146 = sphi 0, %s143
      %s147 = sphi 0, %s146
      %s163 = sphi 0, %s147
      %s169 = sphi 0, %s171
      %s172 = sphi 0, %s169
      %s173 = sphi 0, %s172
      %s189 = sphi 0, %s173
    $region4: #{tpu_custom_call.1} parent=1 // loop_header_branch
      %20 = sbr.rel (%p18) target = $region8
    $region5: #{tpu_custom_call.1} parent=1 // loop_body
      %s22 = ssub.s32 %s17, 1
      %s23 = ssub.s32 %s17, 2
      %s30 = sadd.s32 1, %s25
      %p31 = scmp.ge.s32.totalorder %s30, 4
      %s32 = scalar_select %p31, 0, %s30
      %s33 = sadd.s32 1, %s24
      %s34 = scalar_select %p31, %s33, %s24
      %p35 = scmp.ge.s32.totalorder %s34, 1
      %s36 = scalar_select %p35, 0, %s34
      %s37 = ssub.s32 %s24, %s36
      %p38 = scmp.eq.s32.totalorder %s37, 0
      %s40 = sadd.s32 %s39, 1
      %s41 = scalar_select %p38, %s39, %s40
      %p44 = pneg %p38
      %p45 = scmp.eq.s32.totalorder %s17, 3
      %p46 = por %p44, %p45
      %p47 = scmp.ne.s32.totalorder %s39, %s42
      %p48 = scmp.eq.s32.totalorder %s17, 0
      %p49 = por %p47, %p48
      %p50 = scmp.ne.s32.totalorder %s39, %s42
      %p51 = scmp.eq.s32.totalorder %s22, 3
      %p52 = por %p50, %p51
      %p53 = scmp.ne.s32.totalorder %s42, %s43
      %p54 = scmp.eq.s32.totalorder %s22, 0
      %p55 = por %p53, %p54
      %p56 = scmp.ne.s32.totalorder %s42, %s43
      %p57 = scmp.eq.s32.totalorder %s23, 3
      %p58 = por %p56, %p57
      %p60 = scmp.ne.s32.totalorder %s43, %s59
      %p61 = scmp.eq.s32.totalorder %s23, 0
      %p62 = por %p60, %p61
      %s63 = ssub.s32 %s25, %s32
      %p64 = scmp.eq.s32.totalorder %s63, 0
      %s66 = sadd.s32 %s65, 1
      %s67 = scalar_select %p64, %s65, %s66
      %p70 = pneg %p64
      %p71 = scmp.eq.s32.totalorder %s17, 3
      %p72 = por %p70, %p71
      %p73 = scmp.ne.s32.totalorder %s65, %s68
      %p74 = scmp.eq.s32.totalorder %s17, 0
      %p75 = por %p73, %p74
      %p76 = scmp.ne.s32.totalorder %s65, %s68
      %p77 = scmp.eq.s32.totalorder %s22, 3
      %p78 = por %p76, %p77
      %p79 = scmp.ne.s32.totalorder %s68, %s69
      %p80 = scmp.eq.s32.totalorder %s22, 0
      %p81 = por %p79, %p80
      %p82 = scmp.ne.s32.totalorder %s68, %s69
      %p83 = scmp.eq.s32.totalorder %s23, 3
      %p84 = por %p82, %p83
      %p86 = scmp.ne.s32.totalorder %s69, %s85
      %p87 = scmp.eq.s32.totalorder %s23, 0
      %p88 = por %p86, %p87
      %s89 = ssub.s32 %s25, %s32
      %p90 = scmp.eq.s32.totalorder %s89, 0
      %s92 = sadd.s32 %s91, 1
      %s93 = scalar_select %p90, %s91, %s92
      %p96 = pneg %p90
      %p97 = scmp.eq.s32.totalorder %s17, 3
      %p98 = por %p96, %p97
      %p99 = scmp.ne.s32.totalorder %s91, %s94
      %p100 = scmp.eq.s32.totalorder %s17, 0
      %p101 = por %p99, %p100
      %p102 = scmp.ne.s32.totalorder %s91, %s94
      %p103 = scmp.eq.s32.totalorder %s22, 3
      %p104 = por %p102, %p103
      %p105 = scmp.ne.s32.totalorder %s94, %s95
      %p106 = scmp.eq.s32.totalorder %s22, 0
      %p107 = por %p105, %p106
      %p108 = scmp.ne.s32.totalorder %s94, %s95
      %p109 = scmp.eq.s32.totalorder %s23, 3
      %p110 = por %p108, %p109
      %p112 = scmp.ne.s32.totalorder %s95, %s111
      %p113 = scmp.eq.s32.totalorder %s23, 0
      %p114 = por %p112, %p113
      %s115 = ssub.s32 %s25, %s32
      %p116 = scmp.eq.s32.totalorder %s115, 0
      %s118 = sadd.s32 %s117, 1
      %s119 = scalar_select %p116, %s117, %s118
      %p122 = pneg %p116
      %p123 = scmp.eq.s32.totalorder %s17, 3
      %p124 = por %p122, %p123
      %p125 = scmp.ne.s32.totalorder %s117, %s120
      %p126 = scmp.eq.s32.totalorder %s17, 0
      %p127 = por %p125, %p126
      %p128 = scmp.ne.s32.totalorder %s117, %s120
      %p129 = scmp.eq.s32.totalorder %s22, 3
      %p130 = por %p128, %p129
      %p131 = scmp.ne.s32.totalorder %s120, %s121
      %p132 = scmp.eq.s32.totalorder %s22, 0
      %p133 = por %p131, %p132
      %p134 = scmp.ne.s32.totalorder %s120, %s121
      %p135 = scmp.eq.s32.totalorder %s23, 3
      %p136 = por %p134, %p135
      %p138 = scmp.ne.s32.totalorder %s121, %s137
      %p139 = scmp.eq.s32.totalorder %s23, 0
      %p140 = por %p138, %p139
      %s141 = ssub.s32 %s25, %s32
      %p142 = scmp.eq.s32.totalorder %s141, 0
      %s144 = sadd.s32 %s143, 1
      %s145 = scalar_select %p142, %s143, %s144
      %p148 = pneg %p142
      %p149 = scmp.eq.s32.totalorder %s17, 3
      %p150 = por %p148, %p149
      %p151 = scmp.ne.s32.totalorder %s143, %s146
      %p152 = scmp.eq.s32.totalorder %s17, 0
      %p153 = por %p151, %p152
      %p154 = scmp.ne.s32.totalorder %s143, %s146
      %p155 = scmp.eq.s32.totalorder %s22, 3
      %p156 = por %p154, %p155
      %p157 = scmp.ne.s32.totalorder %s146, %s147
      %p158 = scmp.eq.s32.totalorder %s22, 0
      %p159 = por %p157, %p158
      %p160 = scmp.ne.s32.totalorder %s146, %s147
      %p161 = scmp.eq.s32.totalorder %s23, 3
      %p162 = por %p160, %p161
      %p164 = scmp.ne.s32.totalorder %s147, %s163
      %p165 = scmp.eq.s32.totalorder %s23, 0
      %p166 = por %p164, %p165
      %s167 = ssub.s32 %s24, %s36
      %p168 = scmp.eq.s32.totalorder %s167, 0
      %s170 = sadd.s32 %s169, 1
      %s171 = scalar_select %p168, %s169, %s170
      %p174 = pneg %p168
      %p175 = scmp.eq.s32.totalorder %s17, 3
      %p176 = por %p174, %p175
      %p177 = scmp.ne.s32.totalorder %s169, %s172
      %p178 = scmp.eq.s32.totalorder %s17, 0
      %p179 = por %p177, %p178
      %p180 = scmp.ne.s32.totalorder %s169, %s172
      %p181 = scmp.eq.s32.totalorder %s22, 3
      %p182 = por %p180, %p181
      %p183 = scmp.ne.s32.totalorder %s172, %s173
      %p184 = scmp.eq.s32.totalorder %s22, 0
      %p185 = por %p183, %p184
      %p186 = scmp.ne.s32.totalorder %s172, %s173
      %p187 = scmp.eq.s32.totalorder %s23, 3
      %p188 = por %p186, %p187
      %p190 = scmp.ne.s32.totalorder %s173, %s189
      %p191 = scmp.eq.s32.totalorder %s23, 0
      %p192 = por %p190, %p191
      %p193 = scmp.le.s32.totalorder 1, %s17
      %p194 = scmp.lt.s32.totalorder %s17, 5
      %p195 = pnand %p193, %p194
      %p196 = pneg %p195
      // Predicated region
      $region9: #{tpu_custom_call.1} parent=5 // pred_check
        _
      $region10: #{tpu_custom_call.1} parent=5 // pred_check_branch
        %198 = sbr.rel (%p195) target = $region12
      $region11: #{tpu_custom_call.1} parent=5 // pred_region
        %s199 = ssub.s32 %s17, 1
        // Predicated region
        $region13: #{tpu_custom_call.1} parent=11 // pred_check
          %p200 = pneg %p55
        $region14: #{tpu_custom_call.1} parent=11 // pred_check_branch
          %202 = sbr.rel (%p200) target = $region16
        $region15: #{tpu_custom_call.1} parent=11 // pred_region
          %p203 = scmp.lt.s32.totalorder %s26, 0
          %s204 = scalar_select %p203, %s26, 0
          %s205 = smul.addr %s204, 8
          %s206 = smul.addr %s205, 8
          %s207 = scalar_lea.vmem %s0, %s206
        $region16: #{tpu_custom_call.1} parent=11 // pred_fallthru
          _
      $region12: #{tpu_custom_call.1} parent=5 // pred_fallthru
        _
      %p208 = scmp.lt.s32.totalorder %s17, 4
      // Predicated region
      $region17: #{tpu_custom_call.1} parent=5 // pred_check
        %p209 = pneg %p208
      $region18: #{tpu_custom_call.1} parent=5 // pred_check_branch
        %211 = sbr.rel (%p209) target = $region20
      $region19: #{tpu_custom_call.1} parent=5 // pred_region
        // Predicated region
        $region21: #{tpu_custom_call.1} parent=19 // pred_check
          %p212 = pneg %p75
        $region22: #{tpu_custom_call.1} parent=19 // pred_check_branch
          %214 = sbr.rel (%p212) target = $region24
        $region23: #{tpu_custom_call.1} parent=19 // pred_region
          %s215 = sand.u32 %s65, 1
          %s216 = scalar_lea.sflag [#allocation6], %s215
          %s217 = sand.u32 %s65, 1
          %s218 = smul.addr %s217, 32
          %s219 = scalar_lea.vmem [#allocation5], %s218
          %s221 = ssub.s32 512, 512
          %222 = vsyncadd %s216, %s221
          %s223 = smul.addr %s25, 4
          %s224 = smul.addr %s223, 128
          %s225 = scalar_lea.hbm %s1, %s224
          %s226 = sshll.u32 %s219, 4
          %s227 = int_to_ptr.vmem [resolvable:$true] %s226
          %232 = dma.hbm_to_vmem [thread:$0]  %s225, 512, %s227, %s216, 128, 128, 8
        $region24: #{tpu_custom_call.1} parent=19 // pred_fallthru
          _
        // Predicated region
        $region25: #{tpu_custom_call.1} parent=19 // pred_check
          %p233 = pneg %p101
        $region26: #{tpu_custom_call.1} parent=19 // pred_check_branch
          %235 = sbr.rel (%p233) target = $region28
        $region27: #{tpu_custom_call.1} parent=19 // pred_region
          %s236 = sand.u32 %s91, 1
          %s237 = scalar_lea.sflag [#allocation8], %s236
          %s238 = sand.u32 %s91, 1
          %s239 = smul.addr %s238, 32
          %s240 = scalar_lea.vmem [#allocation7], %s239
          %s242 = ssub.s32 512, 512
          %243 = vsyncadd %s237, %s242
          %s244 = smul.addr %s25, 4
          %s245 = smul.addr %s244, 128
          %s246 = scalar_lea.hbm %s2, %s245
          %s247 = sshll.u32 %s240, 4
          %s248 = int_to_ptr.vmem [resolvable:$true] %s247
          %253 = dma.hbm_to_vmem [thread:$0]  %s246, 512, %s248, %s237, 128, 128, 8
        $region28: #{tpu_custom_call.1} parent=19 // pred_fallthru
          _
        // Predicated region
        $region29: #{tpu_custom_call.1} parent=19 // pred_check
          %p254 = pneg %p127
        $region30: #{tpu_custom_call.1} parent=19 // pred_check_branch
          %256 = sbr.rel (%p254) target = $region32
        $region31: #{tpu_custom_call.1} parent=19 // pred_region
          %p257 = scmp.lt.s32.totalorder %s25, 3
          %s258 = scalar_select %p257, %s25, 3
          %s259 = scalar_lea.vmem %s3, %s258
        $region32: #{tpu_custom_call.1} parent=19 // pred_fallthru
          _
        // Predicated region
        $region33: #{tpu_custom_call.1} parent=19 // pred_check
          %p260 = pneg %p153
        $region34: #{tpu_custom_call.1} parent=19 // pred_check_branch
          %262 = sbr.rel (%p260) target = $region36
        $region35: #{tpu_custom_call.1} parent=19 // pred_region
          %p263 = scmp.lt.s32.totalorder %s25, 3
          %s264 = scalar_select %p263, %s25, 3
          %s265 = scalar_lea.vmem %s4, %s264
        $region36: #{tpu_custom_call.1} parent=19 // pred_fallthru
          _
      $region20: #{tpu_custom_call.1} parent=5 // pred_fallthru
        _
      %p266 = scmp.le.s32.totalorder 1, %s17
      %p267 = scmp.lt.s32.totalorder %s17, 5
      %p268 = pnand %p266, %p267
      %p269 = pneg %p268
      // Predicated region
      $region37: #{tpu_custom_call.1} parent=5 // pred_check
        _
      $region38: #{tpu_custom_call.1} parent=5 // pred_check_branch
        %271 = sbr.rel (%p268) target = $region40
      $region39: #{tpu_custom_call.1} parent=5 // pred_region
        %s272 = ssub.s32 %s17, 1
        %s273 = sand.u32 %s68, 1
        %s274 = scalar_lea.sflag [#allocation6], %s273
        %s275 = sand.u32 %s68, 1
        %s276 = smul.addr %s275, 32
        %s277 = scalar_lea.vmem [#allocation5], %s276
        // Predicated region
        $region41: #{tpu_custom_call.1} parent=39 // pred_check
          %p278 = pneg %p81
        $region42: #{tpu_custom_call.1} parent=39 // pred_check_branch
          %280 = sbr.rel (%p278) target = $region44
        $region43: #{tpu_custom_call.1} parent=39 // pred_region
          %281 = dma.done %s274, 512
        $region44: #{tpu_custom_call.1} parent=39 // pred_fallthru
          _
        %s282 = sand.u32 %s94, 1
        %s283 = scalar_lea.sflag [#allocation8], %s282
        %s284 = sand.u32 %s94, 1
        %s285 = smul.addr %s284, 32
        %s286 = scalar_lea.vmem [#allocation7], %s285
        // Predicated region
        $region45: #{tpu_custom_call.1} parent=39 // pred_check
          %p287 = pneg %p107
        $region46: #{tpu_custom_call.1} parent=39 // pred_check_branch
          %289 = sbr.rel (%p287) target = $region48
        $region47: #{tpu_custom_call.1} parent=39 // pred_region
          %290 = dma.done %s283, 512
        $region48: #{tpu_custom_call.1} parent=39 // pred_fallthru
          _
        %p291 = scmp.lt.s32.totalorder %s26, 0
        %s292 = scalar_select %p291, %s26, 0
        %s293 = smul.addr %s292, 8
        %s294 = smul.addr %s293, 8
        %s295 = scalar_lea.vmem %s0, %s294
        %p296 = pneg %p55
        %p297 = pneg %p52
        %s298 = sand.u32 %s68, 1
        %s299 = scalar_lea.sflag [#allocation6], %s298
        %s300 = sand.u32 %s68, 1
        %s301 = smul.addr %s300, 32
        %s302 = scalar_lea.vmem [#allocation5], %s301
        %p303 = pneg %p81
        %p304 = pneg %p78
        %s305 = sand.u32 %s94, 1
        %s306 = scalar_lea.sflag [#allocation8], %s305
        %s307 = sand.u32 %s94, 1
        %s308 = smul.addr %s307, 32
        %s309 = scalar_lea.vmem [#allocation7], %s308
        %p310 = pneg %p107
        %p311 = pneg %p104
        %p312 = scmp.lt.s32.totalorder %s27, 3
        %s313 = scalar_select %p312, %s27, 3
        %s314 = scalar_lea.vmem %s3, %s313
        %p315 = pneg %p133
        %p316 = pneg %p130
        %p317 = scmp.lt.s32.totalorder %s27, 3
        %s318 = scalar_select %p317, %s27, 3
        %s319 = scalar_lea.vmem %s4, %s318
        %p320 = pneg %p159
        %p321 = pneg %p156
        %p322 = pneg %p185
        %p323 = pneg %p182
        %p324 = scmp.lt.s32.totalorder %s26, 0
        %s325 = scalar_select %p324, %s26, 0
        %s326 = smul.addr %s325, 8
        %s327 = smul.addr %s326, 8
        %s328 = scalar_lea.vmem %s5, %s327
        %p329 = scmp.lt.s32.totalorder %s26, 0
        %s330 = scalar_select %p329, %s26, 0
        %s331 = smul.addr %s330, 8
        %s332 = smul.addr %s331, 8
        %s333 = scalar_lea.vmem %s0, %s332
        %p334 = scmp.lt.s32.totalorder %s27, 3
        %s335 = scalar_select %p334, %s27, 3
        %s336 = scalar_lea.vmem %s3, %s335
        %p337 = scmp.lt.s32.totalorder %s27, 3
        %s338 = scalar_select %p337, %s27, 3
        %s339 = scalar_lea.vmem %s4, %s338
        %p340 = scmp.lt.s32.totalorder %s26, 0
        %s341 = scalar_select %p340, %s26, 0
        %s342 = smul.addr %s341, 8
        %s343 = smul.addr %s342, 8
        %s344 = scalar_lea.vmem %s5, %s343
        %p345 = scmp.eq.s32.totalorder %s27, 0
        // Predicated region
        $region49: #{tpu_custom_call.1} parent=39 // pred_check
          %p346 = pneg %p345
        $region50: #{tpu_custom_call.1} parent=39 // pred_check_branch
          %348 = sbr.rel (%p346) target = $region52
        $region51: #{tpu_custom_call.1} parent=39 // pred_region
          %v349 = vld [vmem:[%s333] sm:$0xff]
          %v350 = vld [vmem:[%s333 + $0x8] sm:$0xff]
          %v351 = vld [vmem:[%s333 + $0x10] sm:$0xff]
          %v352 = vld [vmem:[%s333 + $0x18] sm:$0xff]
          %v353 = vld [vmem:[%s333 + $0x20] sm:$0xff]
          %v354 = vld [vmem:[%s333 + $0x28] sm:$0xff]
          %v355 = vld [vmem:[%s333 + $0x30] sm:$0xff]
          %v356 = vld [vmem:[%s333 + $0x38] sm:$0xff]
          %vm357 = vcmask 261120
          %358 = vst.msk [vmem:[#allocation2] sm:$0xff] %vm357, %v349
          %359 = vst.msk [vmem:[#allocation2 + $0x8] sm:$0xff] %vm357, %v350
          %360 = vst.msk [vmem:[#allocation2 + $0x10] sm:$0xff] %vm357, %v351
          %361 = vst.msk [vmem:[#allocation2 + $0x18] sm:$0xff] %vm357, %v352
          %362 = vst.msk [vmem:[#allocation2 + $0x20] sm:$0xff] %vm357, %v353
          %363 = vst.msk [vmem:[#allocation2 + $0x28] sm:$0xff] %vm357, %v354
          %364 = vst.msk [vmem:[#allocation2 + $0x30] sm:$0xff] %vm357, %v355
          %365 = vst.msk [vmem:[#allocation2 + $0x38] sm:$0xff] %vm357, %v356
        $region52: #{tpu_custom_call.1} parent=39 // pred_fallthru
          _
        %v366 = vld [vmem:[%s277] sm:$0xff]
        %v367 = vld [vmem:[%s277 + $0x8] sm:$0xff]
        %v368 = vld [vmem:[%s277 + $0x10] sm:$0xff]
        %v369 = vld [vmem:[%s277 + $0x18] sm:$0xff]
        %v370 = vld [vmem:[%s286] sm:$0xff]
        %v371 = vld [vmem:[%s286 + $0x8] sm:$0xff]
        %v372 = vld [vmem:[%s286 + $0x10] sm:$0xff]
        %v373 = vld [vmem:[%s286 + $0x18] sm:$0xff]
        %v374 = vld [vmem:[%s336] sm:$0x1]
        %v375 = vld [vmem:[%s339] sm:$0x1]
        %v376 = vld [vmem:[#allocation2] sm:$0xff]
        %v377 = vld [vmem:[#allocation2 + $0x8] sm:$0xff]
        %v378 = vld [vmem:[#allocation2 + $0x10] sm:$0xff]
        %v379 = vld [vmem:[#allocation2 + $0x18] sm:$0xff]
        %v380 = vld [vmem:[#allocation2 + $0x20] sm:$0xff]
        %v381 = vld [vmem:[#allocation2 + $0x28] sm:$0xff]
        %v382 = vld [vmem:[#allocation2 + $0x30] sm:$0xff]
        %v383 = vld [vmem:[#allocation2 + $0x38] sm:$0xff]
        %v385 = vlaneseq
        %v386 = vshrl.u32 %v385, 7
        %v387 = vsub.s32 0, %v386
        %v388 = vrot.slane %v374, %v387
        %vm390 = vcmask 261120
        %v392 = vsel %vm390, %v376, 0
        %v395 = vsel %vm390, %v377, 0
        %v398 = vsel %vm390, %v378, 0
        %v401 = vsel %vm390, %v379, 0
        %v404 = vsel %vm390, %v380, 0
        %v407 = vsel %vm390, %v381, 0
        %v410 = vsel %vm390, %v382, 0
        %v413 = vsel %vm390, %v383, 0
        %415 = vmatprep.subr.mxu0 0.0
        %416 = vmatpush1.msra.mxu0 0.0
        %417 = vmatprep.subr.mxu0 0.0
        %418 = vmatpush1.msra.mxu0 0.0
        %419 = vmatprep.subr.mxu0 0.0
        %420 = vmatpush1.msra.mxu0 0.0
        %421 = vmatprep.subr.mxu0 0.0
        %422 = vmatpush1.msra.mxu0 0.0
        %423 = vmatprep.subr.mxu0 0.0
        %424 = vmatpush1.msra.mxu0 0.0
        %425 = vmatprep.subr.mxu0 0.0
        %426 = vmatpush1.msra.mxu0 0.0
        %427 = vmatprep.subr.mxu0 0.0
        %428 = vmatpush1.msra.mxu0 0.0
        %429 = vmatprep.subr.mxu0 0.0
        %430 = vmatpush1.msra.mxu0 0.0
        %431 = vmatprep.subr.mxu0 0.0
        %432 = vmatpush1.msra.mxu0 0.0
        %433 = vmatprep.subr.mxu0 0.0
        %434 = vmatpush1.msra.mxu0 0.0
        %435 = vmatprep.subr.mxu0 0.0
        %436 = vmatpush1.msra.mxu0 0.0
        %437 = vmatprep.subr.mxu0 0.0
        %438 = vmatpush1.msra.mxu0 0.0
        %439 = vmatprep.subr.mxu0 0.0
        %440 = vmatpush1.msra.mxu0 %v369
        %441 = vmatprep.subr.mxu0 0.0
        %442 = vmatpush1.msra.mxu0 %v368
        %443 = vmatprep.subr.mxu0 0.0
        %444 = vmatpush1.msra.mxu0 %v367
        %445 = vmatprep.subr.mxu0 0.0
        %446 = vmatpush1.msra.mxu0 %v366
        %447 = vmatprep.subr.mxu0 0.0
        %448 = vmatpush2.msra.mxu0 0.0
        %449 = vmatprep.subr.mxu0 0.0
        %450 = vmatpush2.msra.mxu0 0.0
        %451 = vmatprep.subr.mxu0 0.0
        %452 = vmatpush2.msra.mxu0 0.0
        %453 = vmatprep.subr.mxu0 0.0
        %454 = vmatpush2.msra.mxu0 0.0
        %455 = vmatprep.subr.mxu0 0.0
        %456 = vmatpush2.msra.mxu0 0.0
        %457 = vmatprep.subr.mxu0 0.0
        %458 = vmatpush2.msra.mxu0 0.0
        %459 = vmatprep.subr.mxu0 0.0
        %460 = vmatpush2.msra.mxu0 0.0
        %461 = vmatprep.subr.mxu0 0.0
        %462 = vmatpush2.msra.mxu0 0.0
        %463 = vmatprep.subr.mxu0 0.0
        %464 = vmatpush2.msra.mxu0 0.0
        %465 = vmatprep.subr.mxu0 0.0
        %466 = vmatpush2.msra.mxu0 0.0
        %467 = vmatprep.subr.mxu0 0.0
        %468 = vmatpush2.msra.mxu0 0.0
        %469 = vmatprep.subr.mxu0 0.0
        %470 = vmatpush2.msra.mxu0 0.0
        %471 = vmatprep.subr.mxu0 0.0
        %472 = vmatpush2.msra.mxu0 0.0
        %473 = vmatprep.subr.mxu0 0.0
        %474 = vmatpush2.msra.mxu0 0.0
        %475 = vmatprep.subr.mxu0 0.0
        %476 = vmatpush2.msra.mxu0 0.0
        %477 = vmatprep.subr.mxu0 0.0
        %478 = vmatpush2.msra.mxu0 0.0
        %479 = vmatprep.mubr.f32.mxu0 0.0
        %480 = vmatmul.mubr.f32.gmra.mxu0 %v392
        %v481 = vpop.f32.mrf.mxu0
        %v482 = vadd.f32 %v388, %v481
        %v483 = vpop.f32.mrf.mxu0
        %484 = vmatprep.mubr.f32.mxu0 0.0
        %485 = vmatmul.mubr.f32.gmra.mxu0 %v395
        %v486 = vpop.f32.mrf.mxu0
        %v487 = vadd.f32 %v388, %v486
        %v488 = vpop.f32.mrf.mxu0
        %489 = vmatprep.mubr.f32.mxu0 0.0
        %490 = vmatmul.mubr.f32.gmra.mxu0 %v398
        %v491 = vpop.f32.mrf.mxu0
        %v492 = vadd.f32 %v388, %v491
        %v493 = vpop.f32.mrf.mxu0
        %494 = vmatprep.mubr.f32.mxu0 0.0
        %495 = vmatmul.mubr.f32.gmra.mxu0 %v401
        %v496 = vpop.f32.mrf.mxu0
        %v497 = vadd.f32 %v388, %v496
        %v498 = vpop.f32.mrf.mxu0
        %499 = vmatprep.mubr.f32.mxu0 0.0
        %500 = vmatmul.mubr.f32.gmra.mxu0 %v404
        %v501 = vpop.f32.mrf.mxu0
        %v502 = vadd.f32 %v388, %v501
        %v503 = vpop.f32.mrf.mxu0
        %504 = vmatprep.mubr.f32.mxu0 0.0
        %505 = vmatmul.mubr.f32.gmra.mxu0 %v407
        %v506 = vpop.f32.mrf.mxu0
        %v507 = vadd.f32 %v388, %v506
        %v508 = vpop.f32.mrf.mxu0
        %509 = vmatprep.mubr.f32.mxu0 0.0
        %510 = vmatmul.mubr.f32.gmra.mxu0 %v410
        %v511 = vpop.f32.mrf.mxu0
        %v512 = vadd.f32 %v388, %v511
        %v513 = vpop.f32.mrf.mxu0
        %514 = vmatprep.mubr.f32.mxu0 0.0
        %515 = vmatmul.mubr.f32.gmra.mxu0 %v413
        %v516 = vpop.f32.mrf.mxu0
        %v517 = vadd.f32 %v388, %v516
        %v518 = vpop.f32.mrf.mxu0
        %519 = vdwg.mxu0
        %vm520 = vcmask 785408
        %521 = vst.msk [vmem:[#allocation3] sm:$0xff] %vm520, %v482
        %522 = vst.msk [vmem:[#allocation3 + $0x8] sm:$0xff] %vm520, %v487
        %523 = vst.msk [vmem:[#allocation3 + $0x10] sm:$0xff] %vm520, %v492
        %524 = vst.msk [vmem:[#allocation3 + $0x18] sm:$0xff] %vm520, %v497
        %525 = vst.msk [vmem:[#allocation3 + $0x20] sm:$0xff] %vm520, %v502
        %526 = vst.msk [vmem:[#allocation3 + $0x28] sm:$0xff] %vm520, %v507
        %527 = vst.msk [vmem:[#allocation3 + $0x30] sm:$0xff] %vm520, %v512
        %528 = vst.msk [vmem:[#allocation3 + $0x38] sm:$0xff] %vm520, %v517
        %529 = vst.msk [vmem:[#allocation4] sm:$0xff] %vm390, 0.0
        %v530 = vld [vmem:[#allocation3] sm:$0xff]
        %v531 = vld [vmem:[#allocation4] sm:$0xff]
        %v533 = vsel %vm390, %v531, 0
        %535 = vmatprep.subr.mxu0 0.0
        %536 = vmatpush1.msra.mxu0 0.0
        %537 = vmatprep.subr.mxu0 0.0
        %538 = vmatpush1.msra.mxu0 0.0
        %539 = vmatprep.subr.mxu0 0.0
        %540 = vmatpush1.msra.mxu0 0.0
        %541 = vmatprep.subr.mxu0 0.0
        %542 = vmatpush1.msra.mxu0 0.0
        %543 = vmatprep.subr.mxu0 0.0
        %544 = vmatpush1.msra.mxu0 0.0
        %545 = vmatprep.subr.mxu0 0.0
        %546 = vmatpush1.msra.mxu0 0.0
        %547 = vmatprep.subr.mxu0 0.0
        %548 = vmatpush1.msra.mxu0 0.0
        %549 = vmatprep.subr.mxu0 0.0
        %550 = vmatpush1.msra.mxu0 0.0
        %551 = vmatprep.subr.mxu0 0.0
        %552 = vmatpush1.msra.mxu0 0.0
        %553 = vmatprep.subr.mxu0 0.0
        %554 = vmatpush1.msra.mxu0 0.0
        %555 = vmatprep.subr.mxu0 0.0
        %556 = vmatpush1.msra.mxu0 0.0
        %557 = vmatprep.subr.mxu0 0.0
        %558 = vmatpush1.msra.mxu0 0.0
        %559 = vmatprep.subr.mxu0 0.0
        %560 = vmatpush1.msra.mxu0 %v373
        %561 = vmatprep.subr.mxu0 0.0
        %562 = vmatpush1.msra.mxu0 %v372
        %563 = vmatprep.subr.mxu0 0.0
        %564 = vmatpush1.msra.mxu0 %v371
        %565 = vmatprep.subr.mxu0 0.0
        %566 = vmatpush1.msra.mxu0 %v370
        %567 = vmatprep.subr.mxu0 0.0
        %568 = vmatpush2.msra.mxu0 0.0
        %569 = vmatprep.subr.mxu0 0.0
        %570 = vmatpush2.msra.mxu0 0.0
        %571 = vmatprep.subr.mxu0 0.0
        %572 = vmatpush2.msra.mxu0 0.0
        %573 = vmatprep.subr.mxu0 0.0
        %574 = vmatpush2.msra.mxu0 0.0
        %575 = vmatprep.subr.mxu0 0.0
        %576 = vmatpush2.msra.mxu0 0.0
        %577 = vmatprep.subr.mxu0 0.0
        %578 = vmatpush2.msra.mxu0 0.0
        %579 = vmatprep.subr.mxu0 0.0
        %580 = vmatpush2.msra.mxu0 0.0
        %581 = vmatprep.subr.mxu0 0.0
        %582 = vmatpush2.msra.mxu0 0.0
        %583 = vmatprep.subr.mxu0 0.0
        %584 = vmatpush2.msra.mxu0 0.0
        %585 = vmatprep.subr.mxu0 0.0
        %586 = vmatpush2.msra.mxu0 0.0
        %587 = vmatprep.subr.mxu0 0.0
        %588 = vmatpush2.msra.mxu0 0.0
        %589 = vmatprep.subr.mxu0 0.0
        %590 = vmatpush2.msra.mxu0 0.0
        %591 = vmatprep.subr.mxu0 0.0
        %592 = vmatpush2.msra.mxu0 0.0
        %593 = vmatprep.subr.mxu0 0.0
        %594 = vmatpush2.msra.mxu0 0.0
        %595 = vmatprep.subr.mxu0 0.0
        %596 = vmatpush2.msra.mxu0 0.0
        %597 = vmatprep.subr.mxu0 0.0
        %598 = vmatpush2.msra.mxu0 0.0
        %599 = vmatprep.mubr.f32.mxu0 0.0
        %600 = vmatmul.mubr.f32.gmra.mxu0 %v533
        %v601 = vpop.f32.mrf.mxu0
        %v602 = vadd.f32 0.0, %v601
        %v603 = vpop.f32.mrf.mxu0
        %604 = vdwg.mxu0
        %v605 = vadd.f32 %v530, %v602
        %v606 = vxor.u32 %v605, 2147483648
        %v607 = vmul.f32 %v606, 1.442695
        %v608 = vpow.pop %v607
        %v609 = vadd.f32 %v608, 1.0
        %v610 = vrcp.pop %v609
        %v611 = vmul.f32 1.0, %v610
        %v613 = vlaneseq
        %v614 = vshrl.u32 %v613, 7
        %v615 = vsub.s32 0, %v614
        %v616 = vrot.slane %v375, %v615
        %617 = vrot.lane.b32.xlu0 %v616, 64
        %v618 = vpop.permute.xlu0 %617
        %v620 = vadd.f32 %v602, %v618
        %622 = vrot.lane.b32.xlu0 %v620, 64
        %v623 = vpop.permute.xlu0 %622
        %v625 = vmul.f32 %v611, %v623
        %627 = vrot.lane.b32.xlu0 %v625, 64
        %v628 = vpop.permute.xlu0 %627
        %v630 = vadd.f32 %v530, %v628
        %v631 = vtanh.pop %v630
        %v632 = vsub.f32 1.0, %v611
        %634 = vrot.lane.b32.xlu0 %v631, 96
        %v635 = vpop.permute.xlu0 %634
        %v637 = vmul.f32 %v632, %v635
        %638 = vrot.lane.b32.xlu0 %v531, 32
        %v639 = vpop.permute.xlu0 %638
        %v641 = vmul.f32 %v611, %v639
        %v642 = vadd.f32 %v637, %v641
        %644 = vrot.lane.b32.xlu0 %v642, 96
        %v645 = vpop.permute.xlu0 %644
        %647 = vst.msk [vmem:[#allocation4] sm:$0xff] %vm390, %v645
        %648 = vst.msk [vmem:[#allocation2] sm:$0xff] %vm390, %v645
        %v649 = vld [vmem:[#allocation3 + $0x8] sm:$0xff]
        %v650 = vld [vmem:[#allocation4] sm:$0xff]
        %v652 = vsel %vm390, %v650, 0
        %654 = vmatprep.subr.mxu0 0.0
        %655 = vmatpush1.msra.mxu0 0.0
        %656 = vmatprep.subr.mxu0 0.0
        %657 = vmatpush1.msra.mxu0 0.0
        %658 = vmatprep.subr.mxu0 0.0
        %659 = vmatpush1.msra.mxu0 0.0
        %660 = vmatprep.subr.mxu0 0.0
        %661 = vmatpush1.msra.mxu0 0.0
        %662 = vmatprep.subr.mxu0 0.0
        %663 = vmatpush1.msra.mxu0 0.0
        %664 = vmatprep.subr.mxu0 0.0
        %665 = vmatpush1.msra.mxu0 0.0
        %666 = vmatprep.subr.mxu0 0.0
        %667 = vmatpush1.msra.mxu0 0.0
        %668 = vmatprep.subr.mxu0 0.0
        %669 = vmatpush1.msra.mxu0 0.0
        %670 = vmatprep.subr.mxu0 0.0
        %671 = vmatpush1.msra.mxu0 0.0
        %672 = vmatprep.subr.mxu0 0.0
        %673 = vmatpush1.msra.mxu0 0.0
        %674 = vmatprep.subr.mxu0 0.0
        %675 = vmatpush1.msra.mxu0 0.0
        %676 = vmatprep.subr.mxu0 0.0
        %677 = vmatpush1.msra.mxu0 0.0
        %678 = vmatprep.subr.mxu0 0.0
        %679 = vmatpush1.msra.mxu0 %v373
        %680 = vmatprep.subr.mxu0 0.0
        %681 = vmatpush1.msra.mxu0 %v372
        %682 = vmatprep.subr.mxu0 0.0
        %683 = vmatpush1.msra.mxu0 %v371
        %684 = vmatprep.subr.mxu0 0.0
        %685 = vmatpush1.msra.mxu0 %v370
        %686 = vmatprep.subr.mxu0 0.0
        %687 = vmatpush2.msra.mxu0 0.0
        %688 = vmatprep.subr.mxu0 0.0
        %689 = vmatpush2.msra.mxu0 0.0
        %690 = vmatprep.subr.mxu0 0.0
        %691 = vmatpush2.msra.mxu0 0.0
        %692 = vmatprep.subr.mxu0 0.0
        %693 = vmatpush2.msra.mxu0 0.0
        %694 = vmatprep.subr.mxu0 0.0
        %695 = vmatpush2.msra.mxu0 0.0
        %696 = vmatprep.subr.mxu0 0.0
        %697 = vmatpush2.msra.mxu0 0.0
        %698 = vmatprep.subr.mxu0 0.0
        %699 = vmatpush2.msra.mxu0 0.0
        %700 = vmatprep.subr.mxu0 0.0
        %701 = vmatpush2.msra.mxu0 0.0
        %702 = vmatprep.subr.mxu0 0.0
        %703 = vmatpush2.msra.mxu0 0.0
        %704 = vmatprep.subr.mxu0 0.0
        %705 = vmatpush2.msra.mxu0 0.0
        %706 = vmatprep.subr.mxu0 0.0
        %707 = vmatpush2.msra.mxu0 0.0
        %708 = vmatprep.subr.mxu0 0.0
        %709 = vmatpush2.msra.mxu0 0.0
        %710 = vmatprep.subr.mxu0 0.0
        %711 = vmatpush2.msra.mxu0 0.0
        %712 = vmatprep.subr.mxu0 0.0
        %713 = vmatpush2.msra.mxu0 0.0
        %714 = vmatprep.subr.mxu0 0.0
        %715 = vmatpush2.msra.mxu0 0.0
        %716 = vmatprep.subr.mxu0 0.0
        %717 = vmatpush2.msra.mxu0 0.0
        %718 = vmatprep.mubr.f32.mxu0 0.0
        %719 = vmatmul.mubr.f32.gmra.mxu0 %v652
        %v720 = vpop.f32.mrf.mxu0
        %v721 = vadd.f32 0.0, %v720
        %v722 = vpop.f32.mrf.mxu0
        %723 = vdwg.mxu0
        %v724 = vadd.f32 %v649, %v721
        %v725 = vxor.u32 %v724, 2147483648
        %v726 = vmul.f32 %v725, 1.442695
        %v727 = vpow.pop %v726
        %v728 = vadd.f32 %v727, 1.0
        %v729 = vrcp.pop %v728
        %v730 = vmul.f32 1.0, %v729
        %v731 = vadd.f32 %v721, %v618
        %733 = vrot.lane.b32.xlu0 %v731, 64
        %v734 = vpop.permute.xlu0 %733
        %v736 = vmul.f32 %v730, %v734
        %738 = vrot.lane.b32.xlu0 %v736, 64
        %v739 = vpop.permute.xlu0 %738
        %v741 = vadd.f32 %v649, %v739
        %v742 = vtanh.pop %v741
        %v743 = vsub.f32 1.0, %v730
        %745 = vrot.lane.b32.xlu0 %v742, 96
        %v746 = vpop.permute.xlu0 %745
        %v748 = vmul.f32 %v743, %v746
        %749 = vrot.lane.b32.xlu0 %v650, 32
        %v750 = vpop.permute.xlu0 %749
        %v752 = vmul.f32 %v730, %v750
        %v753 = vadd.f32 %v748, %v752
        %755 = vrot.lane.b32.xlu0 %v753, 96
        %v756 = vpop.permute.xlu0 %755
        %758 = vst.msk [vmem:[#allocation4] sm:$0xff] %vm390, %v756
        %759 = vst.msk [vmem:[#allocation2 + $0x8] sm:$0xff] %vm390, %v756
        %v760 = vld [vmem:[#allocation3 + $0x10] sm:$0xff]
        %v761 = vld [vmem:[#allocation4] sm:$0xff]
        %v763 = vsel %vm390, %v761, 0
        %765 = vmatprep.subr.mxu0 0.0
        %766 = vmatpush1.msra.mxu0 0.0
        %767 = vmatprep.subr.mxu0 0.0
        %768 = vmatpush1.msra.mxu0 0.0
        %769 = vmatprep.subr.mxu0 0.0
        %770 = vmatpush1.msra.mxu0 0.0
        %771 = vmatprep.subr.mxu0 0.0
        %772 = vmatpush1.msra.mxu0 0.0
        %773 = vmatprep.subr.mxu0 0.0
        %774 = vmatpush1.msra.mxu0 0.0
        %775 = vmatprep.subr.mxu0 0.0
        %776 = vmatpush1.msra.mxu0 0.0
        %777 = vmatprep.subr.mxu0 0.0
        %778 = vmatpush1.msra.mxu0 0.0
        %779 = vmatprep.subr.mxu0 0.0
        %780 = vmatpush1.msra.mxu0 0.0
        %781 = vmatprep.subr.mxu0 0.0
        %782 = vmatpush1.msra.mxu0 0.0
        %783 = vmatprep.subr.mxu0 0.0
        %784 = vmatpush1.msra.mxu0 0.0
        %785 = vmatprep.subr.mxu0 0.0
        %786 = vmatpush1.msra.mxu0 0.0
        %787 = vmatprep.subr.mxu0 0.0
        %788 = vmatpush1.msra.mxu0 0.0
        %789 = vmatprep.subr.mxu0 0.0
        %790 = vmatpush1.msra.mxu0 %v373
        %791 = vmatprep.subr.mxu0 0.0
        %792 = vmatpush1.msra.mxu0 %v372
        %793 = vmatprep.subr.mxu0 0.0
        %794 = vmatpush1.msra.mxu0 %v371
        %795 = vmatprep.subr.mxu0 0.0
        %796 = vmatpush1.msra.mxu0 %v370
        %797 = vmatprep.subr.mxu0 0.0
        %798 = vmatpush2.msra.mxu0 0.0
        %799 = vmatprep.subr.mxu0 0.0
        %800 = vmatpush2.msra.mxu0 0.0
        %801 = vmatprep.subr.mxu0 0.0
        %802 = vmatpush2.msra.mxu0 0.0
        %803 = vmatprep.subr.mxu0 0.0
        %804 = vmatpush2.msra.mxu0 0.0
        %805 = vmatprep.subr.mxu0 0.0
        %806 = vmatpush2.msra.mxu0 0.0
        %807 = vmatprep.subr.mxu0 0.0
        %808 = vmatpush2.msra.mxu0 0.0
        %809 = vmatprep.subr.mxu0 0.0
        %810 = vmatpush2.msra.mxu0 0.0
        %811 = vmatprep.subr.mxu0 0.0
        %812 = vmatpush2.msra.mxu0 0.0
        %813 = vmatprep.subr.mxu0 0.0
        %814 = vmatpush2.msra.mxu0 0.0
        %815 = vmatprep.subr.mxu0 0.0
        %816 = vmatpush2.msra.mxu0 0.0
        %817 = vmatprep.subr.mxu0 0.0
        %818 = vmatpush2.msra.mxu0 0.0
        %819 = vmatprep.subr.mxu0 0.0
        %820 = vmatpush2.msra.mxu0 0.0
        %821 = vmatprep.subr.mxu0 0.0
        %822 = vmatpush2.msra.mxu0 0.0
        %823 = vmatprep.subr.mxu0 0.0
        %824 = vmatpush2.msra.mxu0 0.0
        %825 = vmatprep.subr.mxu0 0.0
        %826 = vmatpush2.msra.mxu0 0.0
        %827 = vmatprep.subr.mxu0 0.0
        %828 = vmatpush2.msra.mxu0 0.0
        %829 = vmatprep.mubr.f32.mxu0 0.0
        %830 = vmatmul.mubr.f32.gmra.mxu0 %v763
        %v831 = vpop.f32.mrf.mxu0
        %v832 = vadd.f32 0.0, %v831
        %v833 = vpop.f32.mrf.mxu0
        %834 = vdwg.mxu0
        %v835 = vadd.f32 %v760, %v832
        %v836 = vxor.u32 %v835, 2147483648
        %v837 = vmul.f32 %v836, 1.442695
        %v838 = vpow.pop %v837
        %v839 = vadd.f32 %v838, 1.0
        %v840 = vrcp.pop %v839
        %v841 = vmul.f32 1.0, %v840
        %v842 = vadd.f32 %v832, %v618
        %844 = vrot.lane.b32.xlu0 %v842, 64
        %v845 = vpop.permute.xlu0 %844
        %v847 = vmul.f32 %v841, %v845
        %849 = vrot.lane.b32.xlu0 %v847, 64
        %v850 = vpop.permute.xlu0 %849
        %v852 = vadd.f32 %v760, %v850
        %v853 = vtanh.pop %v852
        %v854 = vsub.f32 1.0, %v841
        %856 = vrot.lane.b32.xlu0 %v853, 96
        %v857 = vpop.permute.xlu0 %856
        %v859 = vmul.f32 %v854, %v857
        %860 = vrot.lane.b32.xlu0 %v761, 32
        %v861 = vpop.permute.xlu0 %860
        %v863 = vmul.f32 %v841, %v861
        %v864 = vadd.f32 %v859, %v863
        %866 = vrot.lane.b32.xlu0 %v864, 96
        %v867 = vpop.permute.xlu0 %866
        %869 = vst.msk [vmem:[#allocation4] sm:$0xff] %vm390, %v867
        %870 = vst.msk [vmem:[#allocation2 + $0x10] sm:$0xff] %vm390, %v867
        %v871 = vld [vmem:[#allocation3 + $0x18] sm:$0xff]
        %v872 = vld [vmem:[#allocation4] sm:$0xff]
        %v874 = vsel %vm390, %v872, 0
        %876 = vmatprep.subr.mxu0 0.0
        %877 = vmatpush1.msra.mxu0 0.0
        %878 = vmatprep.subr.mxu0 0.0
        %879 = vmatpush1.msra.mxu0 0.0
        %880 = vmatprep.subr.mxu0 0.0
        %881 = vmatpush1.msra.mxu0 0.0
        %882 = vmatprep.subr.mxu0 0.0
        %883 = vmatpush1.msra.mxu0 0.0
        %884 = vmatprep.subr.mxu0 0.0
        %885 = vmatpush1.msra.mxu0 0.0
        %886 = vmatprep.subr.mxu0 0.0
        %887 = vmatpush1.msra.mxu0 0.0
        %888 = vmatprep.subr.mxu0 0.0
        %889 = vmatpush1.msra.mxu0 0.0
        %890 = vmatprep.subr.mxu0 0.0
        %891 = vmatpush1.msra.mxu0 0.0
        %892 = vmatprep.subr.mxu0 0.0
        %893 = vmatpush1.msra.mxu0 0.0
        %894 = vmatprep.subr.mxu0 0.0
        %895 = vmatpush1.msra.mxu0 0.0
        %896 = vmatprep.subr.mxu0 0.0
        %897 = vmatpush1.msra.mxu0 0.0
        %898 = vmatprep.subr.mxu0 0.0
        %899 = vmatpush1.msra.mxu0 0.0
        %900 = vmatprep.subr.mxu0 0.0
        %901 = vmatpush1.msra.mxu0 %v373
        %902 = vmatprep.subr.mxu0 0.0
        %903 = vmatpush1.msra.mxu0 %v372
        %904 = vmatprep.subr.mxu0 0.0
        %905 = vmatpush1.msra.mxu0 %v371
        %906 = vmatprep.subr.mxu0 0.0
        %907 = vmatpush1.msra.mxu0 %v370
        %908 = vmatprep.subr.mxu0 0.0
        %909 = vmatpush2.msra.mxu0 0.0
        %910 = vmatprep.subr.mxu0 0.0
        %911 = vmatpush2.msra.mxu0 0.0
        %912 = vmatprep.subr.mxu0 0.0
        %913 = vmatpush2.msra.mxu0 0.0
        %914 = vmatprep.subr.mxu0 0.0
        %915 = vmatpush2.msra.mxu0 0.0
        %916 = vmatprep.subr.mxu0 0.0
        %917 = vmatpush2.msra.mxu0 0.0
        %918 = vmatprep.subr.mxu0 0.0
        %919 = vmatpush2.msra.mxu0 0.0
        %920 = vmatprep.subr.mxu0 0.0
        %921 = vmatpush2.msra.mxu0 0.0
        %922 = vmatprep.subr.mxu0 0.0
        %923 = vmatpush2.msra.mxu0 0.0
        %924 = vmatprep.subr.mxu0 0.0
        %925 = vmatpush2.msra.mxu0 0.0
        %926 = vmatprep.subr.mxu0 0.0
        %927 = vmatpush2.msra.mxu0 0.0
        %928 = vmatprep.subr.mxu0 0.0
        %929 = vmatpush2.msra.mxu0 0.0
        %930 = vmatprep.subr.mxu0 0.0
        %931 = vmatpush2.msra.mxu0 0.0
        %932 = vmatprep.subr.mxu0 0.0
        %933 = vmatpush2.msra.mxu0 0.0
        %934 = vmatprep.subr.mxu0 0.0
        %935 = vmatpush2.msra.mxu0 0.0
        %936 = vmatprep.subr.mxu0 0.0
        %937 = vmatpush2.msra.mxu0 0.0
        %938 = vmatprep.subr.mxu0 0.0
        %939 = vmatpush2.msra.mxu0 0.0
        %940 = vmatprep.mubr.f32.mxu0 0.0
        %941 = vmatmul.mubr.f32.gmra.mxu0 %v874
        %v942 = vpop.f32.mrf.mxu0
        %v943 = vadd.f32 0.0, %v942
        %v944 = vpop.f32.mrf.mxu0
        %945 = vdwg.mxu0
        %v946 = vadd.f32 %v871, %v943
        %v947 = vxor.u32 %v946, 2147483648
        %v948 = vmul.f32 %v947, 1.442695
        %v949 = vpow.pop %v948
        %v950 = vadd.f32 %v949, 1.0
        %v951 = vrcp.pop %v950
        %v952 = vmul.f32 1.0, %v951
        %v953 = vadd.f32 %v943, %v618
        %955 = vrot.lane.b32.xlu0 %v953, 64
        %v956 = vpop.permute.xlu0 %955
        %v958 = vmul.f32 %v952, %v956
        %960 = vrot.lane.b32.xlu0 %v958, 64
        %v961 = vpop.permute.xlu0 %960
        %v963 = vadd.f32 %v871, %v961
        %v964 = vtanh.pop %v963
        %v965 = vsub.f32 1.0, %v952
        %967 = vrot.lane.b32.xlu0 %v964, 96
        %v968 = vpop.permute.xlu0 %967
        %v970 = vmul.f32 %v965, %v968
        %971 = vrot.lane.b32.xlu0 %v872, 32
        %v972 = vpop.permute.xlu0 %971
        %v974 = vmul.f32 %v952, %v972
        %v975 = vadd.f32 %v970, %v974
        %977 = vrot.lane.b32.xlu0 %v975, 96
        %v978 = vpop.permute.xlu0 %977
        %980 = vst.msk [vmem:[#allocation4] sm:$0xff] %vm390, %v978
        %981 = vst.msk [vmem:[#allocation2 + $0x18] sm:$0xff] %vm390, %v978
        %v982 = vld [vmem:[#allocation3 + $0x20] sm:$0xff]
        %v983 = vld [vmem:[#allocation4] sm:$0xff]
        %v985 = vsel %vm390, %v983, 0
        %987 = vmatprep.subr.mxu0 0.0
        %988 = vmatpush1.msra.mxu0 0.0
        %989 = vmatprep.subr.mxu0 0.0
        %990 = vmatpush1.msra.mxu0 0.0
        %991 = vmatprep.subr.mxu0 0.0
        %992 = vmatpush1.msra.mxu0 0.0
        %993 = vmatprep.subr.mxu0 0.0
        %994 = vmatpush1.msra.mxu0 0.0
        %995 = vmatprep.subr.mxu0 0.0
        %996 = vmatpush1.msra.mxu0 0.0
        %997 = vmatprep.subr.mxu0 0.0
        %998 = vmatpush1.msra.mxu0 0.0
        %999 = vmatprep.subr.mxu0 0.0
        %1000 = vmatpush1.msra.mxu0 0.0
        %1001 = vmatprep.subr.mxu0 0.0
        %1002 = vmatpush1.msra.mxu0 0.0
        %1003 = vmatprep.subr.mxu0 0.0
        %1004 = vmatpush1.msra.mxu0 0.0
        %1005 = vmatprep.subr.mxu0 0.0
        %1006 = vmatpush1.msra.mxu0 0.0
        %1007 = vmatprep.subr.mxu0 0.0
        %1008 = vmatpush1.msra.mxu0 0.0
        %1009 = vmatprep.subr.mxu0 0.0
        %1010 = vmatpush1.msra.mxu0 0.0
        %1011 = vmatprep.subr.mxu0 0.0
        %1012 = vmatpush1.msra.mxu0 %v373
        %1013 = vmatprep.subr.mxu0 0.0
        %1014 = vmatpush1.msra.mxu0 %v372
        %1015 = vmatprep.subr.mxu0 0.0
        %1016 = vmatpush1.msra.mxu0 %v371
        %1017 = vmatprep.subr.mxu0 0.0
        %1018 = vmatpush1.msra.mxu0 %v370
        %1019 = vmatprep.subr.mxu0 0.0
        %1020 = vmatpush2.msra.mxu0 0.0
        %1021 = vmatprep.subr.mxu0 0.0
        %1022 = vmatpush2.msra.mxu0 0.0
        %1023 = vmatprep.subr.mxu0 0.0
        %1024 = vmatpush2.msra.mxu0 0.0
        %1025 = vmatprep.subr.mxu0 0.0
        %1026 = vmatpush2.msra.mxu0 0.0
        %1027 = vmatprep.subr.mxu0 0.0
        %1028 = vmatpush2.msra.mxu0 0.0
        %1029 = vmatprep.subr.mxu0 0.0
        %1030 = vmatpush2.msra.mxu0 0.0
        %1031 = vmatprep.subr.mxu0 0.0
        %1032 = vmatpush2.msra.mxu0 0.0
        %1033 = vmatprep.subr.mxu0 0.0
        %1034 = vmatpush2.msra.mxu0 0.0
        %1035 = vmatprep.subr.mxu0 0.0
        %1036 = vmatpush2.msra.mxu0 0.0
        %1037 = vmatprep.subr.mxu0 0.0
        %1038 = vmatpush2.msra.mxu0 0.0
        %1039 = vmatprep.subr.mxu0 0.0
        %1040 = vmatpush2.msra.mxu0 0.0
        %1041 = vmatprep.subr.mxu0 0.0
        %1042 = vmatpush2.msra.mxu0 0.0
        %1043 = vmatprep.subr.mxu0 0.0
        %1044 = vmatpush2.msra.mxu0 0.0
        %1045 = vmatprep.subr.mxu0 0.0
        %1046 = vmatpush2.msra.mxu0 0.0
        %1047 = vmatprep.subr.mxu0 0.0
        %1048 = vmatpush2.msra.mxu0 0.0
        %1049 = vmatprep.subr.mxu0 0.0
        %1050 = vmatpush2.msra.mxu0 0.0
        %1051 = vmatprep.mubr.f32.mxu0 0.0
        %1052 = vmatmul.mubr.f32.gmra.mxu0 %v985
        %v1053 = vpop.f32.mrf.mxu0
        %v1054 = vadd.f32 0.0, %v1053
        %v1055 = vpop.f32.mrf.mxu0
        %1056 = vdwg.mxu0
        %v1057 = vadd.f32 %v982, %v1054
        %v1058 = vxor.u32 %v1057, 2147483648
        %v1059 = vmul.f32 %v1058, 1.442695
        %v1060 = vpow.pop %v1059
        %v1061 = vadd.f32 %v1060, 1.0
        %v1062 = vrcp.pop %v1061
        %v1063 = vmul.f32 1.0, %v1062
        %v1064 = vadd.f32 %v1054, %v618
        %1066 = vrot.lane.b32.xlu0 %v1064, 64
        %v1067 = vpop.permute.xlu0 %1066
        %v1069 = vmul.f32 %v1063, %v1067
        %1071 = vrot.lane.b32.xlu0 %v1069, 64
        %v1072 = vpop.permute.xlu0 %1071
        %v1074 = vadd.f32 %v982, %v1072
        %v1075 = vtanh.pop %v1074
        %v1076 = vsub.f32 1.0, %v1063
        %1078 = vrot.lane.b32.xlu0 %v1075, 96
        %v1079 = vpop.permute.xlu0 %1078
        %v1081 = vmul.f32 %v1076, %v1079
        %1082 = vrot.lane.b32.xlu0 %v983, 32
        %v1083 = vpop.permute.xlu0 %1082
        %v1085 = vmul.f32 %v1063, %v1083
        %v1086 = vadd.f32 %v1081, %v1085
        %1088 = vrot.lane.b32.xlu0 %v1086, 96
        %v1089 = vpop.permute.xlu0 %1088
        %1091 = vst.msk [vmem:[#allocation4] sm:$0xff] %vm390, %v1089
        %1092 = vst.msk [vmem:[#allocation2 + $0x20] sm:$0xff] %vm390, %v1089
        %v1093 = vld [vmem:[#allocation3 + $0x28] sm:$0xff]
        %v1094 = vld [vmem:[#allocation4] sm:$0xff]
        %v1096 = vsel %vm390, %v1094, 0
        %1098 = vmatprep.subr.mxu0 0.0
        %1099 = vmatpush1.msra.mxu0 0.0
        %1100 = vmatprep.subr.mxu0 0.0
        %1101 = vmatpush1.msra.mxu0 0.0
        %1102 = vmatprep.subr.mxu0 0.0
        %1103 = vmatpush1.msra.mxu0 0.0
        %1104 = vmatprep.subr.mxu0 0.0
        %1105 = vmatpush1.msra.mxu0 0.0
        %1106 = vmatprep.subr.mxu0 0.0
        %1107 = vmatpush1.msra.mxu0 0.0
        %1108 = vmatprep.subr.mxu0 0.0
        %1109 = vmatpush1.msra.mxu0 0.0
        %1110 = vmatprep.subr.mxu0 0.0
        %1111 = vmatpush1.msra.mxu0 0.0
        %1112 = vmatprep.subr.mxu0 0.0
        %1113 = vmatpush1.msra.mxu0 0.0
        %1114 = vmatprep.subr.mxu0 0.0
        %1115 = vmatpush1.msra.mxu0 0.0
        %1116 = vmatprep.subr.mxu0 0.0
        %1117 = vmatpush1.msra.mxu0 0.0
        %1118 = vmatprep.subr.mxu0 0.0
        %1119 = vmatpush1.msra.mxu0 0.0
        %1120 = vmatprep.subr.mxu0 0.0
        %1121 = vmatpush1.msra.mxu0 0.0
        %1122 = vmatprep.subr.mxu0 0.0
        %1123 = vmatpush1.msra.mxu0 %v373
        %1124 = vmatprep.subr.mxu0 0.0
        %1125 = vmatpush1.msra.mxu0 %v372
        %1126 = vmatprep.subr.mxu0 0.0
        %1127 = vmatpush1.msra.mxu0 %v371
        %1128 = vmatprep.subr.mxu0 0.0
        %1129 = vmatpush1.msra.mxu0 %v370
        %1130 = vmatprep.subr.mxu0 0.0
        %1131 = vmatpush2.msra.mxu0 0.0
        %1132 = vmatprep.subr.mxu0 0.0
        %1133 = vmatpush2.msra.mxu0 0.0
        %1134 = vmatprep.subr.mxu0 0.0
        %1135 = vmatpush2.msra.mxu0 0.0
        %1136 = vmatprep.subr.mxu0 0.0
        %1137 = vmatpush2.msra.mxu0 0.0
        %1138 = vmatprep.subr.mxu0 0.0
        %1139 = vmatpush2.msra.mxu0 0.0
        %1140 = vmatprep.subr.mxu0 0.0
        %1141 = vmatpush2.msra.mxu0 0.0
        %1142 = vmatprep.subr.mxu0 0.0
        %1143 = vmatpush2.msra.mxu0 0.0
        %1144 = vmatprep.subr.mxu0 0.0
        %1145 = vmatpush2.msra.mxu0 0.0
        %1146 = vmatprep.subr.mxu0 0.0
        %1147 = vmatpush2.msra.mxu0 0.0
        %1148 = vmatprep.subr.mxu0 0.0
        %1149 = vmatpush2.msra.mxu0 0.0
        %1150 = vmatprep.subr.mxu0 0.0
        %1151 = vmatpush2.msra.mxu0 0.0
        %1152 = vmatprep.subr.mxu0 0.0
        %1153 = vmatpush2.msra.mxu0 0.0
        %1154 = vmatprep.subr.mxu0 0.0
        %1155 = vmatpush2.msra.mxu0 0.0
        %1156 = vmatprep.subr.mxu0 0.0
        %1157 = vmatpush2.msra.mxu0 0.0
        %1158 = vmatprep.subr.mxu0 0.0
        %1159 = vmatpush2.msra.mxu0 0.0
        %1160 = vmatprep.subr.mxu0 0.0
        %1161 = vmatpush2.msra.mxu0 0.0
        %1162 = vmatprep.mubr.f32.mxu0 0.0
        %1163 = vmatmul.mubr.f32.gmra.mxu0 %v1096
        %v1164 = vpop.f32.mrf.mxu0
        %v1165 = vadd.f32 0.0, %v1164
        %v1166 = vpop.f32.mrf.mxu0
        %1167 = vdwg.mxu0
        %v1168 = vadd.f32 %v1093, %v1165
        %v1169 = vxor.u32 %v1168, 2147483648
        %v1170 = vmul.f32 %v1169, 1.442695
        %v1171 = vpow.pop %v1170
        %v1172 = vadd.f32 %v1171, 1.0
        %v1173 = vrcp.pop %v1172
        %v1174 = vmul.f32 1.0, %v1173
        %v1175 = vadd.f32 %v1165, %v618
        %1177 = vrot.lane.b32.xlu0 %v1175, 64
        %v1178 = vpop.permute.xlu0 %1177
        %v1180 = vmul.f32 %v1174, %v1178
        %1182 = vrot.lane.b32.xlu0 %v1180, 64
        %v1183 = vpop.permute.xlu0 %1182
        %v1185 = vadd.f32 %v1093, %v1183
        %v1186 = vtanh.pop %v1185
        %v1187 = vsub.f32 1.0, %v1174
        %1189 = vrot.lane.b32.xlu0 %v1186, 96
        %v1190 = vpop.permute.xlu0 %1189
        %v1192 = vmul.f32 %v1187, %v1190
        %1193 = vrot.lane.b32.xlu0 %v1094, 32
        %v1194 = vpop.permute.xlu0 %1193
        %v1196 = vmul.f32 %v1174, %v1194
        %v1197 = vadd.f32 %v1192, %v1196
        %1199 = vrot.lane.b32.xlu0 %v1197, 96
        %v1200 = vpop.permute.xlu0 %1199
        %1202 = vst.msk [vmem:[#allocation4] sm:$0xff] %vm390, %v1200
        %1203 = vst.msk [vmem:[#allocation2 + $0x28] sm:$0xff] %vm390, %v1200
        %v1204 = vld [vmem:[#allocation3 + $0x30] sm:$0xff]
        %v1205 = vld [vmem:[#allocation4] sm:$0xff]
        %v1207 = vsel %vm390, %v1205, 0
        %1209 = vmatprep.subr.mxu0 0.0
        %1210 = vmatpush1.msra.mxu0 0.0
        %1211 = vmatprep.subr.mxu0 0.0
        %1212 = vmatpush1.msra.mxu0 0.0
        %1213 = vmatprep.subr.mxu0 0.0
        %1214 = vmatpush1.msra.mxu0 0.0
        %1215 = vmatprep.subr.mxu0 0.0
        %1216 = vmatpush1.msra.mxu0 0.0
        %1217 = vmatprep.subr.mxu0 0.0
        %1218 = vmatpush1.msra.mxu0 0.0
        %1219 = vmatprep.subr.mxu0 0.0
        %1220 = vmatpush1.msra.mxu0 0.0
        %1221 = vmatprep.subr.mxu0 0.0
        %1222 = vmatpush1.msra.mxu0 0.0
        %1223 = vmatprep.subr.mxu0 0.0
        %1224 = vmatpush1.msra.mxu0 0.0
        %1225 = vmatprep.subr.mxu0 0.0
        %1226 = vmatpush1.msra.mxu0 0.0
        %1227 = vmatprep.subr.mxu0 0.0
        %1228 = vmatpush1.msra.mxu0 0.0
        %1229 = vmatprep.subr.mxu0 0.0
        %1230 = vmatpush1.msra.mxu0 0.0
        %1231 = vmatprep.subr.mxu0 0.0
        %1232 = vmatpush1.msra.mxu0 0.0
        %1233 = vmatprep.subr.mxu0 0.0
        %1234 = vmatpush1.msra.mxu0 %v373
        %1235 = vmatprep.subr.mxu0 0.0
        %1236 = vmatpush1.msra.mxu0 %v372
        %1237 = vmatprep.subr.mxu0 0.0
        %1238 = vmatpush1.msra.mxu0 %v371
        %1239 = vmatprep.subr.mxu0 0.0
        %1240 = vmatpush1.msra.mxu0 %v370
        %1241 = vmatprep.subr.mxu0 0.0
        %1242 = vmatpush2.msra.mxu0 0.0
        %1243 = vmatprep.subr.mxu0 0.0
        %1244 = vmatpush2.msra.mxu0 0.0
        %1245 = vmatprep.subr.mxu0 0.0
        %1246 = vmatpush2.msra.mxu0 0.0
        %1247 = vmatprep.subr.mxu0 0.0
        %1248 = vmatpush2.msra.mxu0 0.0
        %1249 = vmatprep.subr.mxu0 0.0
        %1250 = vmatpush2.msra.mxu0 0.0
        %1251 = vmatprep.subr.mxu0 0.0
        %1252 = vmatpush2.msra.mxu0 0.0
        %1253 = vmatprep.subr.mxu0 0.0
        %1254 = vmatpush2.msra.mxu0 0.0
        %1255 = vmatprep.subr.mxu0 0.0
        %1256 = vmatpush2.msra.mxu0 0.0
        %1257 = vmatprep.subr.mxu0 0.0
        %1258 = vmatpush2.msra.mxu0 0.0
        %1259 = vmatprep.subr.mxu0 0.0
        %1260 = vmatpush2.msra.mxu0 0.0
        %1261 = vmatprep.subr.mxu0 0.0
        %1262 = vmatpush2.msra.mxu0 0.0
        %1263 = vmatprep.subr.mxu0 0.0
        %1264 = vmatpush2.msra.mxu0 0.0
        %1265 = vmatprep.subr.mxu0 0.0
        %1266 = vmatpush2.msra.mxu0 0.0
        %1267 = vmatprep.subr.mxu0 0.0
        %1268 = vmatpush2.msra.mxu0 0.0
        %1269 = vmatprep.subr.mxu0 0.0
        %1270 = vmatpush2.msra.mxu0 0.0
        %1271 = vmatprep.subr.mxu0 0.0
        %1272 = vmatpush2.msra.mxu0 0.0
        %1273 = vmatprep.mubr.f32.mxu0 0.0
        %1274 = vmatmul.mubr.f32.gmra.mxu0 %v1207
        %v1275 = vpop.f32.mrf.mxu0
        %v1276 = vadd.f32 0.0, %v1275
        %v1277 = vpop.f32.mrf.mxu0
        %1278 = vdwg.mxu0
        %v1279 = vadd.f32 %v1204, %v1276
        %v1280 = vxor.u32 %v1279, 2147483648
        %v1281 = vmul.f32 %v1280, 1.442695
        %v1282 = vpow.pop %v1281
        %v1283 = vadd.f32 %v1282, 1.0
        %v1284 = vrcp.pop %v1283
        %v1285 = vmul.f32 1.0, %v1284
        %v1286 = vadd.f32 %v1276, %v618
        %1288 = vrot.lane.b32.xlu0 %v1286, 64
        %v1289 = vpop.permute.xlu0 %1288
        %v1291 = vmul.f32 %v1285, %v1289
        %1293 = vrot.lane.b32.xlu0 %v1291, 64
        %v1294 = vpop.permute.xlu0 %1293
        %v1296 = vadd.f32 %v1204, %v1294
        %v1297 = vtanh.pop %v1296
        %v1298 = vsub.f32 1.0, %v1285
        %1300 = vrot.lane.b32.xlu0 %v1297, 96
        %v1301 = vpop.permute.xlu0 %1300
        %v1303 = vmul.f32 %v1298, %v1301
        %1304 = vrot.lane.b32.xlu0 %v1205, 32
        %v1305 = vpop.permute.xlu0 %1304
        %v1307 = vmul.f32 %v1285, %v1305
        %v1308 = vadd.f32 %v1303, %v1307
        %1310 = vrot.lane.b32.xlu0 %v1308, 96
        %v1311 = vpop.permute.xlu0 %1310
        %1313 = vst.msk [vmem:[#allocation4] sm:$0xff] %vm390, %v1311
        %1314 = vst.msk [vmem:[#allocation2 + $0x30] sm:$0xff] %vm390, %v1311
        %v1315 = vld [vmem:[#allocation3 + $0x38] sm:$0xff]
        %v1316 = vld [vmem:[#allocation4] sm:$0xff]
        %v1318 = vsel %vm390, %v1316, 0
        %1320 = vmatprep.subr.mxu0 0.0
        %1321 = vmatpush1.msra.mxu0 0.0
        %1322 = vmatprep.subr.mxu0 0.0
        %1323 = vmatpush1.msra.mxu0 0.0
        %1324 = vmatprep.subr.mxu0 0.0
        %1325 = vmatpush1.msra.mxu0 0.0
        %1326 = vmatprep.subr.mxu0 0.0
        %1327 = vmatpush1.msra.mxu0 0.0
        %1328 = vmatprep.subr.mxu0 0.0
        %1329 = vmatpush1.msra.mxu0 0.0
        %1330 = vmatprep.subr.mxu0 0.0
        %1331 = vmatpush1.msra.mxu0 0.0
        %1332 = vmatprep.subr.mxu0 0.0
        %1333 = vmatpush1.msra.mxu0 0.0
        %1334 = vmatprep.subr.mxu0 0.0
        %1335 = vmatpush1.msra.mxu0 0.0
        %1336 = vmatprep.subr.mxu0 0.0
        %1337 = vmatpush1.msra.mxu0 0.0
        %1338 = vmatprep.subr.mxu0 0.0
        %1339 = vmatpush1.msra.mxu0 0.0
        %1340 = vmatprep.subr.mxu0 0.0
        %1341 = vmatpush1.msra.mxu0 0.0
        %1342 = vmatprep.subr.mxu0 0.0
        %1343 = vmatpush1.msra.mxu0 0.0
        %1344 = vmatprep.subr.mxu0 0.0
        %1345 = vmatpush1.msra.mxu0 %v373
        %1346 = vmatprep.subr.mxu0 0.0
        %1347 = vmatpush1.msra.mxu0 %v372
        %1348 = vmatprep.subr.mxu0 0.0
        %1349 = vmatpush1.msra.mxu0 %v371
        %1350 = vmatprep.subr.mxu0 0.0
        %1351 = vmatpush1.msra.mxu0 %v370
        %1352 = vmatprep.subr.mxu0 0.0
        %1353 = vmatpush2.msra.mxu0 0.0
        %1354 = vmatprep.subr.mxu0 0.0
        %1355 = vmatpush2.msra.mxu0 0.0
        %1356 = vmatprep.subr.mxu0 0.0
        %1357 = vmatpush2.msra.mxu0 0.0
        %1358 = vmatprep.subr.mxu0 0.0
        %1359 = vmatpush2.msra.mxu0 0.0
        %1360 = vmatprep.subr.mxu0 0.0
        %1361 = vmatpush2.msra.mxu0 0.0
        %1362 = vmatprep.subr.mxu0 0.0
        %1363 = vmatpush2.msra.mxu0 0.0
        %1364 = vmatprep.subr.mxu0 0.0
        %1365 = vmatpush2.msra.mxu0 0.0
        %1366 = vmatprep.subr.mxu0 0.0
        %1367 = vmatpush2.msra.mxu0 0.0
        %1368 = vmatprep.subr.mxu0 0.0
        %1369 = vmatpush2.msra.mxu0 0.0
        %1370 = vmatprep.subr.mxu0 0.0
        %1371 = vmatpush2.msra.mxu0 0.0
        %1372 = vmatprep.subr.mxu0 0.0
        %1373 = vmatpush2.msra.mxu0 0.0
        %1374 = vmatprep.subr.mxu0 0.0
        %1375 = vmatpush2.msra.mxu0 0.0
        %1376 = vmatprep.subr.mxu0 0.0
        %1377 = vmatpush2.msra.mxu0 0.0
        %1378 = vmatprep.subr.mxu0 0.0
        %1379 = vmatpush2.msra.mxu0 0.0
        %1380 = vmatprep.subr.mxu0 0.0
        %1381 = vmatpush2.msra.mxu0 0.0
        %1382 = vmatprep.subr.mxu0 0.0
        %1383 = vmatpush2.msra.mxu0 0.0
        %1384 = vmatprep.mubr.f32.mxu0 0.0
        %1385 = vmatmul.mubr.f32.gmra.mxu0 %v1318
        %v1386 = vpop.f32.mrf.mxu0
        %v1387 = vadd.f32 0.0, %v1386
        %v1388 = vpop.f32.mrf.mxu0
        %1389 = vdwg.mxu0
        %v1390 = vadd.f32 %v1315, %v1387
        %v1391 = vxor.u32 %v1390, 2147483648
        %v1392 = vmul.f32 %v1391, 1.442695
        %v1393 = vpow.pop %v1392
        %v1394 = vadd.f32 %v1393, 1.0
        %v1395 = vrcp.pop %v1394
        %v1396 = vmul.f32 1.0, %v1395
        %v1397 = vadd.f32 %v1387, %v618
        %1399 = vrot.lane.b32.xlu0 %v1397, 64
        %v1400 = vpop.permute.xlu0 %1399
        %v1402 = vmul.f32 %v1396, %v1400
        %1404 = vrot.lane.b32.xlu0 %v1402, 64
        %v1405 = vpop.permute.xlu0 %1404
        %v1407 = vadd.f32 %v1315, %v1405
        %v1408 = vtanh.pop %v1407
        %v1409 = vsub.f32 1.0, %v1396
        %1411 = vrot.lane.b32.xlu0 %v1408, 96
        %v1412 = vpop.permute.xlu0 %1411
        %v1414 = vmul.f32 %v1409, %v1412
        %1415 = vrot.lane.b32.xlu0 %v1316, 32
        %v1416 = vpop.permute.xlu0 %1415
        %v1418 = vmul.f32 %v1396, %v1416
        %v1419 = vadd.f32 %v1414, %v1418
        %1421 = vrot.lane.b32.xlu0 %v1419, 96
        %v1422 = vpop.permute.xlu0 %1421
        %1424 = vst.msk [vmem:[#allocation4] sm:$0xff] %vm390, %v1422
        %1425 = vst.msk [vmem:[#allocation2 + $0x38] sm:$0xff] %vm390, %v1422
        %p1426 = scmp.eq.s32.totalorder %s27, 3
        // Predicated region
        $region53: #{tpu_custom_call.1} parent=39 // pred_check
          %p1427 = pneg %p1426
        $region54: #{tpu_custom_call.1} parent=39 // pred_check_branch
          %1429 = sbr.rel (%p1427) target = $region56
        $region55: #{tpu_custom_call.1} parent=39 // pred_region
          %v1430 = vld [vmem:[#allocation2] sm:$0xff]
          %v1431 = vld [vmem:[#allocation2 + $0x8] sm:$0xff]
          %v1432 = vld [vmem:[#allocation2 + $0x10] sm:$0xff]
          %v1433 = vld [vmem:[#allocation2 + $0x18] sm:$0xff]
          %v1434 = vld [vmem:[#allocation2 + $0x20] sm:$0xff]
          %v1435 = vld [vmem:[#allocation2 + $0x28] sm:$0xff]
          %v1436 = vld [vmem:[#allocation2 + $0x30] sm:$0xff]
          %v1437 = vld [vmem:[#allocation2 + $0x38] sm:$0xff]
          %v1438 = vmax.f32 %v1430, 0.0
          %v1439 = vmax.f32 %v1431, 0.0
          %v1440 = vmax.f32 %v1432, 0.0
          %v1441 = vmax.f32 %v1433, 0.0
          %v1442 = vmax.f32 %v1434, 0.0
          %v1443 = vmax.f32 %v1435, 0.0
          %v1444 = vmax.f32 %v1436, 0.0
          %v1445 = vmax.f32 %v1437, 0.0
          %1446 = vst.msk [vmem:[%s344] sm:$0xff] %vm390, %v1438
          %1447 = vst.msk [vmem:[%s344 + $0x8] sm:$0xff] %vm390, %v1439
          %1448 = vst.msk [vmem:[%s344 + $0x10] sm:$0xff] %vm390, %v1440
          %1449 = vst.msk [vmem:[%s344 + $0x18] sm:$0xff] %vm390, %v1441
          %1450 = vst.msk [vmem:[%s344 + $0x20] sm:$0xff] %vm390, %v1442
          %1451 = vst.msk [vmem:[%s344 + $0x28] sm:$0xff] %vm390, %v1443
          %1452 = vst.msk [vmem:[%s344 + $0x30] sm:$0xff] %vm390, %v1444
          %1453 = vst.msk [vmem:[%s344 + $0x38] sm:$0xff] %vm390, %v1445
        $region56: #{tpu_custom_call.1} parent=39 // pred_fallthru
          _
        %p1454 = scmp.lt.s32.totalorder %s26, 0
        %s1455 = scalar_select %p1454, %s26, 0
        %s1456 = smul.addr %s1455, 8
        %s1457 = smul.addr %s1456, 8
        %s1458 = scalar_lea.vmem %s5, %s1457
        // Predicated region
        $region57: #{tpu_custom_call.1} parent=39 // pred_check
          %p1459 = pneg %p182
        $region58: #{tpu_custom_call.1} parent=39 // pred_check_branch
          %1461 = sbr.rel (%p1459) target = $region60
        $region59: #{tpu_custom_call.1} parent=39 // pred_region
          _
        $region60: #{tpu_custom_call.1} parent=39 // pred_fallthru
          _
        // Predicated region
        $region61: #{tpu_custom_call.1} parent=39 // pred_check
          %p1462 = pneg %p182
        $region62: #{tpu_custom_call.1} parent=39 // pred_check_branch
          %1464 = sbr.rel (%p1462) target = $region64
        $region63: #{tpu_custom_call.1} parent=39 // pred_region
          %p1465 = scmp.lt.s32.totalorder %s26, 0
          %s1466 = scalar_select %p1465, %s26, 0
          %s1467 = smul.addr %s1466, 8
          %s1468 = smul.addr %s1467, 8
          %s1469 = scalar_lea.vmem %s5, %s1468
        $region64: #{tpu_custom_call.1} parent=39 // pred_fallthru
          _
      $region40: #{tpu_custom_call.1} parent=5 // pred_fallthru
        _
      %p1470 = scmp.le.s32.totalorder 2, %s17
      // Predicated region
      $region65: #{tpu_custom_call.1} parent=5 // pred_check
        %p1471 = pneg %p1470
      $region66: #{tpu_custom_call.1} parent=5 // pred_check_branch
        %1473 = sbr.rel (%p1471) target = $region68
      $region67: #{tpu_custom_call.1} parent=5 // pred_region
        %s1474 = ssub.s32 %s17, 2
      $region68: #{tpu_custom_call.1} parent=5 // pred_fallthru
        _
    $region6: #{tpu_custom_call.1} parent=1 // loop_footer
      %s21 = sadd.s32 1, %s17
    $region7: #{tpu_custom_call.1} parent=1 // loop_footer_branch
      %16 = sbr.rel target = $region3
    $region8: #{tpu_custom_call.1} parent=1 // loop_exit
      _
    %1475 = vsyncpa [#allocation6], 1
    %s1476 = scalar_lea.sflag [#allocation6], 1
    %1477 = vsyncpa %s1476, 1
    %1478 = vsyncpa [#allocation8], 1
    %s1479 = scalar_lea.sflag [#allocation8], 1
    %1480 = vsyncpa %s1479, 1

</llo_original>
